<compile_context>
chip_gen: v5e
topology: v5e:2x2
jax: 0.10.0
libtpu: 0.0.40
codegen_flags: <defaults>
</compile_context>

<pallas_src>
import jax
import jax.numpy as jnp
import numpy as np
from jax.experimental import pallas as pl
from jax.experimental.pallas import tpu as pltpu

N_HIDDEN = 8          # hidden Linear+BN+tanh layers
HID = 10              # hidden width
B_INIT = -0.2         # Linear bias init (matches the tutorial)
EPS = 1e-5            # BatchNorm eps (PyTorch default)

# ---- output-slab row layout (single lane-dense output) ------------------------------
LAYER_STRIDE = 16                          # 8-aligned per-layer band (rows 10..15 pad)
PRE_BASE = 0                               # pre-activation of layer i: rows [i*16, i*16+10)
ACT_BASE = N_HIDDEN * LAYER_STRIDE         # 128: tanh activation of layer i
XBN_ROW = 2 * N_HIDDEN * LAYER_STRIDE      # 256: BN(input)
OUT_ROW = XBN_ROW + 1                      # 257: prediction
SLAB_ROWS = XBN_ROW + 8                    # 264 rows total (multiple of 8)


# --------------------------------------------------------------------------------------
# Kernel
# --------------------------------------------------------------------------------------
def _bn_train(x, gamma, beta):
    """PyTorch BatchNorm1d (training mode) on a (features, batch) tile.

    Per-feature (row) batch stats over the lane axis, biased two-pass variance
    (robust when |mean| >> std), fused scale/shift apply: full-width work is a
    single x*scale + shift."""
    n_inv = 1.0 / x.shape[-1]
    mu = jnp.sum(x, axis=-1, keepdims=True) * n_inv               # (F, 1)
    d = x - mu
    var = jnp.sum(d * d, axis=-1, keepdims=True) * n_inv          # (F, 1), biased
    scale = gamma * jax.lax.rsqrt(var + EPS)                      # (F, 1)
    shift = beta - mu * scale                                     # (F, 1)
    return x * scale + shift


def net_kernel(scal_ref, x_ref, w0_ref, wt_ref, b_ref, g_ref, be_ref, wp_ref, slab_ref):
    """One mini-batch per grid step, transposed (features, batch) layout.

    scal_ref : SMEM (3,)      = [input-BN gamma, input-BN beta, prediction bias]
    x_ref    : (1, N)         = mini-batch, features-on-sublanes / batch-on-lanes
    w0_ref   : (10, 1)        = layer-0 weight, (out, in)
    wt_ref   : (7, 10, 10)    = layer 1..7 weights, (out, in)
    b_ref    : (8, 10, 1)     = Linear bias columns
    g_ref    : (8, 10, 1)     = BN gammas
    be_ref   : (8, 10, 1)     = BN betas
    wp_ref   : (10, 1)        = prediction weight column
    slab_ref : (SLAB_ROWS, N) = packed outputs (see row-layout constants above)
    """
    g_in = scal_ref[0]
    b_in = scal_ref[1]
    bp = scal_ref[2]

    # ---- BN on the 1-feature input ---------------------------------------------------
    xbn = _bn_train(x_ref[...], g_in, b_in)                       # (1, N)
    slab_ref[XBN_ROW:XBN_ROW + 1, :] = xbn

    # ---- 8 x (Linear -> BN -> tanh); unrolled (only 2 vregs live per activation) -----
    h = xbn
    for i in range(N_HIDDEN):
        if i == 0:
            # K = 1 contraction == outer product: cheaper as a VPU broadcast than MXU.
            pre = w0_ref[...] * h + b_ref[0]                      # (10, N)
        else:
            # (10, 10) @ (10, N) on the otherwise-idle MXU.
            pre = jnp.dot(wt_ref[i - 1], h,
                          preferred_element_type=jnp.float32) + b_ref[i]
        r = PRE_BASE + i * LAYER_STRIDE
        slab_ref[r:r + HID, :] = pre                              # pre-activation
        h = jnp.tanh(_bn_train(pre, g_ref[i], be_ref[i]))         # (10, N)
        a = ACT_BASE + i * LAYER_STRIDE
        slab_ref[a:a + HID, :] = h                                # activation

    # ---- prediction head: (1,10)@(10,N) as a 10-row sublane reduce --------------------
    out = jnp.sum(wp_ref[...] * h, axis=0, keepdims=True) + bp    # (1, N)
    slab_ref[OUT_ROW:OUT_ROW + 1, :] = out


# --------------------------------------------------------------------------------------
# Params / wrappers
# --------------------------------------------------------------------------------------
def init_params(key):
    """Matches the torch module init: W ~ N(0, 0.1), b = -0.2, BN weight=1, bias=0."""
    k0, k1, k2 = jax.random.split(key, 3)
    f32 = jnp.float32
    return dict(
        bn_in_g=jnp.float32(1.0),
        bn_in_b=jnp.float32(0.0),
        w0=0.1 * jax.random.normal(k0, (1, HID), dtype=f32),                  # (in, out)
        w_stack=0.1 * jax.random.normal(k1, (N_HIDDEN - 1, HID, HID), dtype=f32),
        b_all=jnp.full((N_HIDDEN, HID), B_INIT, dtype=f32),
        gamma=jnp.ones((N_HIDDEN, HID), dtype=f32),
        beta=jnp.zeros((N_HIDDEN, HID), dtype=f32),
        wp=0.1 * jax.random.normal(k2, (HID, 1), dtype=f32),
        bp=jnp.float32(B_INIT),
    )


def _const_spec(shape):
    zeros = (0,) * len(shape)
    return pl.BlockSpec(shape, lambda *_: zeros)   # constant index -> resident in VMEM


def _net_pallas(xt, p):
    """xt: (G, 1, N) transposed mini-batches -> (G, SLAB_ROWS, N) packed outputs."""
    G, _, N = xt.shape
    f32 = jnp.float32

    scal = jnp.stack([p["bn_in_g"], p["bn_in_b"], p["bp"]]).astype(f32)       # (3,)
    w0c = p["w0"].T                                                           # (10, 1)
    wt = jnp.transpose(p["w_stack"], (0, 2, 1))                               # (7, 10, 10)
    bcol = p["b_all"][..., None].astype(f32)                                  # (8, 10, 1)
    gcol = p["gamma"][..., None].astype(f32)
    becol = p["beta"][..., None].astype(f32)
    wpc = p["wp"]                                                             # (10, 1)

    grid_spec = pltpu.PrefetchScalarGridSpec(
        num_scalar_prefetch=0,
        grid=(G,),
        in_specs=[
            pl.BlockSpec(memory_space=pltpu.MemorySpace.SMEM),      # 3 true scalars
            pl.BlockSpec((None, 1, N), lambda g: (g, 0, 0)),        # x (per mini-batch)
            _const_spec((HID, 1)),                                  # w0
            _const_spec((N_HIDDEN - 1, HID, HID)),                  # w1..7
            _const_spec((N_HIDDEN, HID, 1)),                        # biases
            _const_spec((N_HIDDEN, HID, 1)),                        # gammas
            _const_spec((N_HIDDEN, HID, 1)),                        # betas
            _const_spec((HID, 1)),                                  # wp
        ],
        out_specs=pl.BlockSpec((None, SLAB_ROWS, N), lambda g: (g, 0, 0)),
    )
    return pl.pallas_call(
        net_kernel,
        out_shape=jax.ShapeDtypeStruct((G, SLAB_ROWS, N), f32),
        grid_spec=grid_spec,
        compiler_params=pltpu.CompilerParams(dimension_semantics=("parallel",)),
    )(scal, xt, w0c, wt, bcol, gcol, becol, wpc)


def _unpack(slab, x_batches):
    """(G, SLAB_ROWS, N) slab -> batch-major (out, layer_input, pre_activation)."""
    t = lambda s: jnp.swapaxes(s, 1, 2)
    out = t(slab[:, OUT_ROW:OUT_ROW + 1, :])                       # (G, N, 1)
    layer_input = [t(slab[:, XBN_ROW:XBN_ROW + 1, :])]             # BN(input)
    pre_activation = [x_batches]                                   # raw input
    for i in range(N_HIDDEN):
        r = PRE_BASE + i * LAYER_STRIDE
        a = ACT_BASE + i * LAYER_STRIDE
        pre_activation.append(t(slab[:, r:r + HID, :]))
        layer_input.append(t(slab[:, a:a + HID, :]))
    return out, layer_input, pre_activation


def net_forward_batched(x_batches, p):
    """(G, N, 1): G independent mini-batches, one 'parallel' grid step each.
    BN statistics are per mini-batch, so each step matches the torch module exactly."""
    xt = jnp.transpose(x_batches, (0, 2, 1))                       # (G, 1, N)
    slab = _net_pallas(xt, p)
    return _unpack(slab, x_batches)


def net_forward(x, p):
    """Single mini-batch: same returns as the torch module's forward."""
    out, li, pa = net_forward_batched(x[None], p)
    return out[0], [v[0] for v in li], [v[0] for v in pa]


# --------------------------------------------------------------------------------------
# Pure-XLA reference (textbook Linear + BatchNorm1d math, HIGHEST-precision dots)
# --------------------------------------------------------------------------------------
def net_forward_ref(x, p):
    high = jax.lax.Precision.HIGHEST

    def bn(h, g, b):
        mu = jnp.mean(h, axis=0, keepdims=True)
        var = jnp.mean(jnp.square(h - mu), axis=0, keepdims=True)  # biased (training)
        return (h - mu) * jax.lax.rsqrt(var + EPS) * g + b

    pre_activation = [x]
    h = bn(x, p["bn_in_g"], p["bn_in_b"])
    layer_input = [h]
    for i in range(N_HIDDEN):
        w = p["w0"] if i == 0 else p["w_stack"][i - 1]             # (in, out)
        pre = jnp.dot(h, w, precision=high) + p["b_all"][i]
        pre_activation.append(pre)
        h = jnp.tanh(bn(pre, p["gamma"][i], p["beta"][i]))
        layer_input.append(h)
    out = jnp.dot(h, p["wp"], precision=high) + p["bp"]
    return out, layer_input, pre_activation


if __name__ == "__main__":
    key = jax.random.PRNGKey(0)
    kx, kb, kp = jax.random.split(key, 3)
    params = init_params(kp)

    # Cross-backend matmul / transcendental rounding is re-scaled by BatchNorm at every
    # layer, so allow a small absolute slack; structural bugs produce O(0.1..1) errors
    # and are still caught.
    RTOL, ATOL = 5e-3, 2e-3

    def check(actual, expected):
        np.testing.assert_allclose(np.asarray(actual), np.asarray(expected),
                                   rtol=RTOL, atol=ATOL)

    # ---- single mini-batch (the torch module's forward) -----------------------------
    N = 64
    x = jax.random.uniform(kx, (N, 1), dtype=jnp.float32, minval=-7.0, maxval=10.0)
    out, layer_input, pre_activation = net_forward(x, params)
    jax.block_until_ready(out)

    out_r, li_r, pa_r = net_forward_ref(x, params)
    check(out, out_r)
    for a, b in zip(layer_input, li_r):
        check(a, b)
    for a, b in zip(pre_activation, pa_r):
        check(a, b)

    # ---- several independent mini-batches on the 'parallel' grid axis ---------------
    G = 4
    xb = jax.random.uniform(kb, (G, N, 1), dtype=jnp.float32, minval=-7.0, maxval=10.0)
    out_b, li_b, pa_b = net_forward_batched(xb, params)
    jax.block_until_ready(out_b)
    for g in range(G):
        out_rg, li_rg, pa_rg = net_forward_ref(xb[g], params)
        check(out_b[g], out_rg)
        check(li_b[-1][g], li_rg[-1])      # deepest (most error-amplified) activation
        check(pa_b[-1][g], pa_rg[-1])

    # TODO(synk): BatchNorm running-mean/var buffer updates (a training-time side effect
    # of the torch forward) are not modeled; they do not affect the returned values.
    print("KERNEL_OK")
</pallas_src>

<mosaic_0001>
module attributes {stable_mosaic.version = 11 : i64} {
  func.func @net_kernel(%arg0: i32, %arg1: memref<3xf32, #tpu.memory_space<smem>>, %arg2: memref<1x1x64xf32, #tpu.memory_space<vmem>>, %arg3: memref<10x1xf32, #tpu.memory_space<vmem>>, %arg4: memref<7x10x10xf32, #tpu.memory_space<vmem>>, %arg5: memref<8x10x1xf32, #tpu.memory_space<vmem>>, %arg6: memref<8x10x1xf32, #tpu.memory_space<vmem>>, %arg7: memref<8x10x1xf32, #tpu.memory_space<vmem>>, %arg8: memref<10x1xf32, #tpu.memory_space<vmem>>, %arg9: memref<1x264x64xf32, #tpu.memory_space<vmem>>) attributes {dimension_semantics = [#tpu.dimension_semantics<parallel>], iteration_bounds = array<i64: 1>, scalar_prefetch = 0 : i64, scratch_operands = 0 : i64, tpu.core_type = #tpu.core_type<tc>, window_params = [{transform_indices = @transform_0, window_bounds = array<i64: 3>}, {transform_indices = @transform_1, window_bounds = array<i64: 1, 1, 64>}, {pipeline_mode = #tpu.pipeline_mode<synchronous>, transform_indices = @transform_2, window_bounds = array<i64: 10, 1>}, {pipeline_mode = #tpu.pipeline_mode<synchronous>, transform_indices = @transform_3, window_bounds = array<i64: 7, 10, 10>}, {pipeline_mode = #tpu.pipeline_mode<synchronous>, transform_indices = @transform_4, window_bounds = array<i64: 8, 10, 1>}, {pipeline_mode = #tpu.pipeline_mode<synchronous>, transform_indices = @transform_5, window_bounds = array<i64: 8, 10, 1>}, {pipeline_mode = #tpu.pipeline_mode<synchronous>, transform_indices = @transform_6, window_bounds = array<i64: 8, 10, 1>}, {pipeline_mode = #tpu.pipeline_mode<synchronous>, transform_indices = @transform_7, window_bounds = array<i64: 10, 1>}, {transform_indices = @transform_8, window_bounds = array<i64: 1, 264, 64>}]} {
    %c0 = arith.constant 0 : index
    %0 = memref.load %arg1[%c0] : memref<3xf32, #tpu.memory_space<smem>>
    %c1 = arith.constant 1 : index
    %1 = memref.load %arg1[%c1] : memref<3xf32, #tpu.memory_space<smem>>
    %c2 = arith.constant 2 : index
    %2 = memref.load %arg1[%c2] : memref<3xf32, #tpu.memory_space<smem>>
    %c0_0 = arith.constant 0 : index
    %c0_1 = arith.constant 0 : index
    %c0_2 = arith.constant 0 : index
    %3 = vector.load %arg2[%c0_0, %c0_1, %c0_2] : memref<1x1x64xf32, #tpu.memory_space<vmem>>, vector<1x1x64xf32>
    %4 = vector.shape_cast %3 : vector<1x1x64xf32> to vector<1x64xf32>
    %cst = arith.constant dense<0.000000e+00> : vector<1xf32>
    %5 = vector.multi_reduction <add>, %4, %cst [1] : vector<1x64xf32> to vector<1xf32>
    %6 = vector.shape_cast %5 : vector<1xf32> to vector<1x1xf32>
    %cst_3 = arith.constant 1.562500e-02 : f32
    %7 = vector.broadcast %cst_3 : f32 to vector<1x1xf32>
    %8 = arith.mulf %6, %7 : vector<1x1xf32>
    %9 = vector.broadcast %8 : vector<1x1xf32> to vector<1x64xf32>
    %10 = arith.subf %4, %9 : vector<1x64xf32>
    %11 = arith.mulf %10, %10 : vector<1x64xf32>
    %cst_4 = arith.constant dense<0.000000e+00> : vector<1xf32>
    %12 = vector.multi_reduction <add>, %11, %cst_4 [1] : vector<1x64xf32> to vector<1xf32>
    %13 = vector.shape_cast %12 : vector<1xf32> to vector<1x1xf32>
    %cst_5 = arith.constant 1.562500e-02 : f32
    %14 = vector.broadcast %cst_5 : f32 to vector<1x1xf32>
    %15 = arith.mulf %13, %14 : vector<1x1xf32>
    %cst_6 = arith.constant 9.99999974E-6 : f32
    %16 = vector.broadcast %cst_6 : f32 to vector<1x1xf32>
    %17 = arith.addf %15, %16 : vector<1x1xf32>
    %18 = math.rsqrt %17 : vector<1x1xf32>
    %19 = vector.broadcast %0 : f32 to vector<1x1xf32>
    %20 = arith.mulf %19, %18 : vector<1x1xf32>
    %21 = arith.mulf %8, %20 : vector<1x1xf32>
    %22 = vector.broadcast %1 : f32 to vector<1x1xf32>
    %23 = arith.subf %22, %21 : vector<1x1xf32>
    %24 = vector.broadcast %20 : vector<1x1xf32> to vector<1x64xf32>
    %25 = arith.mulf %4, %24 : vector<1x64xf32>
    %26 = vector.broadcast %23 : vector<1x1xf32> to vector<1x64xf32>
    %27 = arith.addf %25, %26 : vector<1x64xf32>
    %c0_7 = arith.constant 0 : index
    %c256 = arith.constant 256 : index
    %c0_8 = arith.constant 0 : index
    %28 = vector.load %arg9[%c0_7, %c256, %c0_8] : memref<1x264x64xf32, #tpu.memory_space<vmem>>, vector<1x1x64xf32>
    %29 = vector.shape_cast %28 : vector<1x1x64xf32> to vector<1x64xf32>
    %30 = vector.shape_cast %27 : vector<1x64xf32> to vector<1x1x64xf32>
    tpu.vector_store %arg9[%c0_7, %c256, %c0_8], %30 {strides = array<i32>} : memref<1x264x64xf32, #tpu.memory_space<vmem>>, vector<1x1x64xf32>,
    %c0_9 = arith.constant 0 : index
    %c0_10 = arith.constant 0 : index
    %31 = vector.load %arg3[%c0_9, %c0_10] : memref<10x1xf32, #tpu.memory_space<vmem>>, vector<10x1xf32>
    %32 = vector.broadcast %31 : vector<10x1xf32> to vector<10x64xf32>
    %33 = vector.broadcast %27 : vector<1x64xf32> to vector<10x64xf32>
    %34 = arith.mulf %32, %33 : vector<10x64xf32>
    %c0_11 = arith.constant 0 : index
    %c0_12 = arith.constant 0 : index
    %c0_13 = arith.constant 0 : index
    %35 = vector.load %arg5[%c0_11, %c0_12, %c0_13] : memref<8x10x1xf32, #tpu.memory_space<vmem>>, vector<1x10x1xf32>
    %36 = vector.shape_cast %35 : vector<1x10x1xf32> to vector<10x1xf32>
    %37 = vector.broadcast %36 : vector<10x1xf32> to vector<10x64xf32>
    %38 = arith.addf %34, %37 : vector<10x64xf32>
    %c0_14 = arith.constant 0 : index
    %c0_15 = arith.constant 0 : index
    %c0_16 = arith.constant 0 : index
    %39 = vector.load %arg9[%c0_14, %c0_15, %c0_16] : memref<1x264x64xf32, #tpu.memory_space<vmem>>, vector<1x10x64xf32>
    %40 = vector.shape_cast %39 : vector<1x10x64xf32> to vector<10x64xf32>
    %41 = vector.shape_cast %38 : vector<10x64xf32> to vector<1x10x64xf32>
    tpu.vector_store %arg9[%c0_14, %c0_15, %c0_16], %41 {strides = array<i32>} : memref<1x264x64xf32, #tpu.memory_space<vmem>>, vector<1x10x64xf32>,
    %c0_17 = arith.constant 0 : index
    %c0_18 = arith.constant 0 : index
    %c0_19 = arith.constant 0 : index
    %42 = vector.load %arg6[%c0_17, %c0_18, %c0_19] : memref<8x10x1xf32, #tpu.memory_space<vmem>>, vector<1x10x1xf32>
    %43 = vector.shape_cast %42 : vector<1x10x1xf32> to vector<10x1xf32>
    %c0_20 = arith.constant 0 : index
    %c0_21 = arith.constant 0 : index
    %c0_22 = arith.constant 0 : index
    %44 = vector.load %arg7[%c0_20, %c0_21, %c0_22] : memref<8x10x1xf32, #tpu.memory_space<vmem>>, vector<1x10x1xf32>
    %45 = vector.shape_cast %44 : vector<1x10x1xf32> to vector<10x1xf32>
    %cst_23 = arith.constant dense<0.000000e+00> : vector<10xf32>
    %46 = vector.multi_reduction <add>, %38, %cst_23 [1] : vector<10x64xf32> to vector<10xf32>
    %47 = vector.shape_cast %46 : vector<10xf32> to vector<10x1xf32>
    %cst_24 = arith.constant 1.562500e-02 : f32
    %48 = vector.broadcast %cst_24 : f32 to vector<10x1xf32>
    %49 = arith.mulf %47, %48 : vector<10x1xf32>
    %50 = vector.broadcast %49 : vector<10x1xf32> to vector<10x64xf32>
    %51 = arith.subf %38, %50 : vector<10x64xf32>
    %52 = arith.mulf %51, %51 : vector<10x64xf32>
    %cst_25 = arith.constant dense<0.000000e+00> : vector<10xf32>
    %53 = vector.multi_reduction <add>, %52, %cst_25 [1] : vector<10x64xf32> to vector<10xf32>
    %54 = vector.shape_cast %53 : vector<10xf32> to vector<10x1xf32>
    %cst_26 = arith.constant 1.562500e-02 : f32
    %55 = vector.broadcast %cst_26 : f32 to vector<10x1xf32>
    %56 = arith.mulf %54, %55 : vector<10x1xf32>
    %cst_27 = arith.constant 9.99999974E-6 : f32
    %57 = vector.broadcast %cst_27 : f32 to vector<10x1xf32>
    %58 = arith.addf %56, %57 : vector<10x1xf32>
    %59 = math.rsqrt %58 : vector<10x1xf32>
    %60 = arith.mulf %43, %59 : vector<10x1xf32>
    %61 = arith.mulf %49, %60 : vector<10x1xf32>
    %62 = arith.subf %45, %61 : vector<10x1xf32>
    %63 = vector.broadcast %60 : vector<10x1xf32> to vector<10x64xf32>
    %64 = arith.mulf %38, %63 : vector<10x64xf32>
    %65 = vector.broadcast %62 : vector<10x1xf32> to vector<10x64xf32>
    %66 = arith.addf %64, %65 : vector<10x64xf32>
    %67 = math.tanh %66 : vector<10x64xf32>
    %c0_28 = arith.constant 0 : index
    %c128 = arith.constant 128 : index
    %c0_29 = arith.constant 0 : index
    %68 = vector.load %arg9[%c0_28, %c128, %c0_29] : memref<1x264x64xf32, #tpu.memory_space<vmem>>, vector<1x10x64xf32>
    %69 = vector.shape_cast %68 : vector<1x10x64xf32> to vector<10x64xf32>
    %70 = vector.shape_cast %67 : vector<10x64xf32> to vector<1x10x64xf32>
    tpu.vector_store %arg9[%c0_28, %c128, %c0_29], %70 {strides = array<i32>} : memref<1x264x64xf32, #tpu.memory_space<vmem>>, vector<1x10x64xf32>,
    %c0_30 = arith.constant 0 : index
    %c0_31 = arith.constant 0 : index
    %c0_32 = arith.constant 0 : index
    %71 = vector.load %arg4[%c0_30, %c0_31, %c0_32] : memref<7x10x10xf32, #tpu.memory_space<vmem>>, vector<1x10x10xf32>
    %72 = vector.shape_cast %71 : vector<1x10x10xf32> to vector<10x10xf32>
    %cst_33 = arith.constant dense<0.000000e+00> : vector<10x64xf32>
    %73 = tpu.matmul %72, %67, %cst_33 {dimension_numbers = #tpu.dot_dimension_numbers<[1], [0], [0], [1], [0, 0, 1, 1], [], []>} : vector<10x10xf32>, vector<10x64xf32>, vector<10x64xf32> -> vector<10x64xf32>
    %c1_34 = arith.constant 1 : index
    %c0_35 = arith.constant 0 : index
    %c0_36 = arith.constant 0 : index
    %74 = vector.load %arg5[%c1_34, %c0_35, %c0_36] : memref<8x10x1xf32, #tpu.memory_space<vmem>>, vector<1x10x1xf32>
    %75 = vector.shape_cast %74 : vector<1x10x1xf32> to vector<10x1xf32>
    %76 = vector.broadcast %75 : vector<10x1xf32> to vector<10x64xf32>
    %77 = arith.addf %73, %76 : vector<10x64xf32>
    %c0_37 = arith.constant 0 : index
    %c16 = arith.constant 16 : index
    %c0_38 = arith.constant 0 : index
    %78 = vector.load %arg9[%c0_37, %c16, %c0_38] : memref<1x264x64xf32, #tpu.memory_space<vmem>>, vector<1x10x64xf32>
    %79 = vector.shape_cast %78 : vector<1x10x64xf32> to vector<10x64xf32>
    %80 = vector.shape_cast %77 : vector<10x64xf32> to vector<1x10x64xf32>
    tpu.vector_store %arg9[%c0_37, %c16, %c0_38], %80 {strides = array<i32>} : memref<1x264x64xf32, #tpu.memory_space<vmem>>, vector<1x10x64xf32>,
    %c1_39 = arith.constant 1 : index
    %c0_40 = arith.constant 0 : index
    %c0_41 = arith.constant 0 : index
    %81 = vector.load %arg6[%c1_39, %c0_40, %c0_41] : memref<8x10x1xf32, #tpu.memory_space<vmem>>, vector<1x10x1xf32>
    %82 = vector.shape_cast %81 : vector<1x10x1xf32> to vector<10x1xf32>
    %c1_42 = arith.constant 1 : index
    %c0_43 = arith.constant 0 : index
    %c0_44 = arith.constant 0 : index
    %83 = vector.load %arg7[%c1_42, %c0_43, %c0_44] : memref<8x10x1xf32, #tpu.memory_space<vmem>>, vector<1x10x1xf32>
    %84 = vector.shape_cast %83 : vector<1x10x1xf32> to vector<10x1xf32>
    %cst_45 = arith.constant dense<0.000000e+00> : vector<10xf32>
    %85 = vector.multi_reduction <add>, %77, %cst_45 [1] : vector<10x64xf32> to vector<10xf32>
    %86 = vector.shape_cast %85 : vector<10xf32> to vector<10x1xf32>
    %cst_46 = arith.constant 1.562500e-02 : f32
    %87 = vector.broadcast %cst_46 : f32 to vector<10x1xf32>
    %88 = arith.mulf %86, %87 : vector<10x1xf32>
    %89 = vector.broadcast %88 : vector<10x1xf32> to vector<10x64xf32>
    %90 = arith.subf %77, %89 : vector<10x64xf32>
    %91 = arith.mulf %90, %90 : vector<10x64xf32>
    %cst_47 = arith.constant dense<0.000000e+00> : vector<10xf32>
    %92 = vector.multi_reduction <add>, %91, %cst_47 [1] : vector<10x64xf32> to vector<10xf32>
    %93 = vector.shape_cast %92 : vector<10xf32> to vector<10x1xf32>
    %cst_48 = arith.constant 1.562500e-02 : f32
    %94 = vector.broadcast %cst_48 : f32 to vector<10x1xf32>
    %95 = arith.mulf %93, %94 : vector<10x1xf32>
    %cst_49 = arith.constant 9.99999974E-6 : f32
    %96 = vector.broadcast %cst_49 : f32 to vector<10x1xf32>
    %97 = arith.addf %95, %96 : vector<10x1xf32>
    %98 = math.rsqrt %97 : vector<10x1xf32>
    %99 = arith.mulf %82, %98 : vector<10x1xf32>
    %100 = arith.mulf %88, %99 : vector<10x1xf32>
    %101 = arith.subf %84, %100 : vector<10x1xf32>
    %102 = vector.broadcast %99 : vector<10x1xf32> to vector<10x64xf32>
    %103 = arith.mulf %77, %102 : vector<10x64xf32>
    %104 = vector.broadcast %101 : vector<10x1xf32> to vector<10x64xf32>
    %105 = arith.addf %103, %104 : vector<10x64xf32>
    %106 = math.tanh %105 : vector<10x64xf32>
    %c0_50 = arith.constant 0 : index
    %c144 = arith.constant 144 : index
    %c0_51 = arith.constant 0 : index
    %107 = vector.load %arg9[%c0_50, %c144, %c0_51] : memref<1x264x64xf32, #tpu.memory_space<vmem>>, vector<1x10x64xf32>
    %108 = vector.shape_cast %107 : vector<1x10x64xf32> to vector<10x64xf32>
    %109 = vector.shape_cast %106 : vector<10x64xf32> to vector<1x10x64xf32>
    tpu.vector_store %arg9[%c0_50, %c144, %c0_51], %109 {strides = array<i32>} : memref<1x264x64xf32, #tpu.memory_space<vmem>>, vector<1x10x64xf32>,
    %c1_52 = arith.constant 1 : index
    %c0_53 = arith.constant 0 : index
    %c0_54 = arith.constant 0 : index
    %110 = vector.load %arg4[%c1_52, %c0_53, %c0_54] : memref<7x10x10xf32, #tpu.memory_space<vmem>>, vector<1x10x10xf32>
    %111 = vector.shape_cast %110 : vector<1x10x10xf32> to vector<10x10xf32>
    %cst_55 = arith.constant dense<0.000000e+00> : vector<10x64xf32>
    %112 = tpu.matmul %111, %106, %cst_55 {dimension_numbers = #tpu.dot_dimension_numbers<[1], [0], [0], [1], [0, 0, 1, 1], [], []>} : vector<10x10xf32>, vector<10x64xf32>, vector<10x64xf32> -> vector<10x64xf32>
    %c2_56 = arith.constant 2 : index
    %c0_57 = arith.constant 0 : index
    %c0_58 = arith.constant 0 : index
    %113 = vector.load %arg5[%c2_56, %c0_57, %c0_58] : memref<8x10x1xf32, #tpu.memory_space<vmem>>, vector<1x10x1xf32>
    %114 = vector.shape_cast %113 : vector<1x10x1xf32> to vector<10x1xf32>
    %115 = vector.broadcast %114 : vector<10x1xf32> to vector<10x64xf32>
    %116 = arith.addf %112, %115 : vector<10x64xf32>
    %c0_59 = arith.constant 0 : index
    %c32 = arith.constant 32 : index
    %c0_60 = arith.constant 0 : index
    %117 = vector.load %arg9[%c0_59, %c32, %c0_60] : memref<1x264x64xf32, #tpu.memory_space<vmem>>, vector<1x10x64xf32>
    %118 = vector.shape_cast %117 : vector<1x10x64xf32> to vector<10x64xf32>
    %119 = vector.shape_cast %116 : vector<10x64xf32> to vector<1x10x64xf32>
    tpu.vector_store %arg9[%c0_59, %c32, %c0_60], %119 {strides = array<i32>} : memref<1x264x64xf32, #tpu.memory_space<vmem>>, vector<1x10x64xf32>,
    %c2_61 = arith.constant 2 : index
    %c0_62 = arith.constant 0 : index
    %c0_63 = arith.constant 0 : index
    %120 = vector.load %arg6[%c2_61, %c0_62, %c0_63] : memref<8x10x1xf32, #tpu.memory_space<vmem>>, vector<1x10x1xf32>
    %121 = vector.shape_cast %120 : vector<1x10x1xf32> to vector<10x1xf32>
    %c2_64 = arith.constant 2 : index
    %c0_65 = arith.constant 0 : index
    %c0_66 = arith.constant 0 : index
    %122 = vector.load %arg7[%c2_64, %c0_65, %c0_66] : memref<8x10x1xf32, #tpu.memory_space<vmem>>, vector<1x10x1xf32>
    %123 = vector.shape_cast %122 : vector<1x10x1xf32> to vector<10x1xf32>
    %cst_67 = arith.constant dense<0.000000e+00> : vector<10xf32>
    %124 = vector.multi_reduction <add>, %116, %cst_67 [1] : vector<10x64xf32> to vector<10xf32>
    %125 = vector.shape_cast %124 : vector<10xf32> to vector<10x1xf32>
    %cst_68 = arith.constant 1.562500e-02 : f32
    %126 = vector.broadcast %cst_68 : f32 to vector<10x1xf32>
    %127 = arith.mulf %125, %126 : vector<10x1xf32>
    %128 = vector.broadcast %127 : vector<10x1xf32> to vector<10x64xf32>
    %129 = arith.subf %116, %128 : vector<10x64xf32>
    %130 = arith.mulf %129, %129 : vector<10x64xf32>
    %cst_69 = arith.constant dense<0.000000e+00> : vector<10xf32>
    %131 = vector.multi_reduction <add>, %130, %cst_69 [1] : vector<10x64xf32> to vector<10xf32>
    %132 = vector.shape_cast %131 : vector<10xf32> to vector<10x1xf32>
    %cst_70 = arith.constant 1.562500e-02 : f32
    %133 = vector.broadcast %cst_70 : f32 to vector<10x1xf32>
    %134 = arith.mulf %132, %133 : vector<10x1xf32>
    %cst_71 = arith.constant 9.99999974E-6 : f32
    %135 = vector.broadcast %cst_71 : f32 to vector<10x1xf32>
    %136 = arith.addf %134, %135 : vector<10x1xf32>
    %137 = math.rsqrt %136 : vector<10x1xf32>
    %138 = arith.mulf %121, %137 : vector<10x1xf32>
    %139 = arith.mulf %127, %138 : vector<10x1xf32>
    %140 = arith.subf %123, %139 : vector<10x1xf32>
    %141 = vector.broadcast %138 : vector<10x1xf32> to vector<10x64xf32>
    %142 = arith.mulf %116, %141 : vector<10x64xf32>
    %143 = vector.broadcast %140 : vector<10x1xf32> to vector<10x64xf32>
    %144 = arith.addf %142, %143 : vector<10x64xf32>
    %145 = math.tanh %144 : vector<10x64xf32>
    %c0_72 = arith.constant 0 : index
    %c160 = arith.constant 160 : index
    %c0_73 = arith.constant 0 : index
    %146 = vector.load %arg9[%c0_72, %c160, %c0_73] : memref<1x264x64xf32, #tpu.memory_space<vmem>>, vector<1x10x64xf32>
    %147 = vector.shape_cast %146 : vector<1x10x64xf32> to vector<10x64xf32>
    %148 = vector.shape_cast %145 : vector<10x64xf32> to vector<1x10x64xf32>
    tpu.vector_store %arg9[%c0_72, %c160, %c0_73], %148 {strides = array<i32>} : memref<1x264x64xf32, #tpu.memory_space<vmem>>, vector<1x10x64xf32>,
    %c2_74 = arith.constant 2 : index
    %c0_75 = arith.constant 0 : index
    %c0_76 = arith.constant 0 : index
    %149 = vector.load %arg4[%c2_74, %c0_75, %c0_76] : memref<7x10x10xf32, #tpu.memory_space<vmem>>, vector<1x10x10xf32>
    %150 = vector.shape_cast %149 : vector<1x10x10xf32> to vector<10x10xf32>
    %cst_77 = arith.constant dense<0.000000e+00> : vector<10x64xf32>
    %151 = tpu.matmul %150, %145, %cst_77 {dimension_numbers = #tpu.dot_dimension_numbers<[1], [0], [0], [1], [0, 0, 1, 1], [], []>} : vector<10x10xf32>, vector<10x64xf32>, vector<10x64xf32> -> vector<10x64xf32>
    %c3 = arith.constant 3 : index
    %c0_78 = arith.constant 0 : index
    %c0_79 = arith.constant 0 : index
    %152 = vector.load %arg5[%c3, %c0_78, %c0_79] : memref<8x10x1xf32, #tpu.memory_space<vmem>>, vector<1x10x1xf32>
    %153 = vector.shape_cast %152 : vector<1x10x1xf32> to vector<10x1xf32>
    %154 = vector.broadcast %153 : vector<10x1xf32> to vector<10x64xf32>
    %155 = arith.addf %151, %154 : vector<10x64xf32>
    %c0_80 = arith.constant 0 : index
    %c48 = arith.constant 48 : index
    %c0_81 = arith.constant 0 : index
    %156 = vector.load %arg9[%c0_80, %c48, %c0_81] : memref<1x264x64xf32, #tpu.memory_space<vmem>>, vector<1x10x64xf32>
    %157 = vector.shape_cast %156 : vector<1x10x64xf32> to vector<10x64xf32>
    %158 = vector.shape_cast %155 : vector<10x64xf32> to vector<1x10x64xf32>
    tpu.vector_store %arg9[%c0_80, %c48, %c0_81], %158 {strides = array<i32>} : memref<1x264x64xf32, #tpu.memory_space<vmem>>, vector<1x10x64xf32>,
    %c3_82 = arith.constant 3 : index
    %c0_83 = arith.constant 0 : index
    %c0_84 = arith.constant 0 : index
    %159 = vector.load %arg6[%c3_82, %c0_83, %c0_84] : memref<8x10x1xf32, #tpu.memory_space<vmem>>, vector<1x10x1xf32>
    %160 = vector.shape_cast %159 : vector<1x10x1xf32> to vector<10x1xf32>
    %c3_85 = arith.constant 3 : index
    %c0_86 = arith.constant 0 : index
    %c0_87 = arith.constant 0 : index
    %161 = vector.load %arg7[%c3_85, %c0_86, %c0_87] : memref<8x10x1xf32, #tpu.memory_space<vmem>>, vector<1x10x1xf32>
    %162 = vector.shape_cast %161 : vector<1x10x1xf32> to vector<10x1xf32>
    %cst_88 = arith.constant dense<0.000000e+00> : vector<10xf32>
    %163 = vector.multi_reduction <add>, %155, %cst_88 [1] : vector<10x64xf32> to vector<10xf32>
    %164 = vector.shape_cast %163 : vector<10xf32> to vector<10x1xf32>
    %cst_89 = arith.constant 1.562500e-02 : f32
    %165 = vector.broadcast %cst_89 : f32 to vector<10x1xf32>
    %166 = arith.mulf %164, %165 : vector<10x1xf32>
    %167 = vector.broadcast %166 : vector<10x1xf32> to vector<10x64xf32>
    %168 = arith.subf %155, %167 : vector<10x64xf32>
    %169 = arith.mulf %168, %168 : vector<10x64xf32>
    %cst_90 = arith.constant dense<0.000000e+00> : vector<10xf32>
    %170 = vector.multi_reduction <add>, %169, %cst_90 [1] : vector<10x64xf32> to vector<10xf32>
    %171 = vector.shape_cast %170 : vector<10xf32> to vector<10x1xf32>
    %cst_91 = arith.constant 1.562500e-02 : f32
    %172 = vector.broadcast %cst_91 : f32 to vector<10x1xf32>
    %173 = arith.mulf %171, %172 : vector<10x1xf32>
    %cst_92 = arith.constant 9.99999974E-6 : f32
    %174 = vector.broadcast %cst_92 : f32 to vector<10x1xf32>
    %175 = arith.addf %173, %174 : vector<10x1xf32>
    %176 = math.rsqrt %175 : vector<10x1xf32>
    %177 = arith.mulf %160, %176 : vector<10x1xf32>
    %178 = arith.mulf %166, %177 : vector<10x1xf32>
    %179 = arith.subf %162, %178 : vector<10x1xf32>
    %180 = vector.broadcast %177 : vector<10x1xf32> to vector<10x64xf32>
    %181 = arith.mulf %155, %180 : vector<10x64xf32>
    %182 = vector.broadcast %179 : vector<10x1xf32> to vector<10x64xf32>
    %183 = arith.addf %181, %182 : vector<10x64xf32>
    %184 = math.tanh %183 : vector<10x64xf32>
    %c0_93 = arith.constant 0 : index
    %c176 = arith.constant 176 : index
    %c0_94 = arith.constant 0 : index
    %185 = vector.load %arg9[%c0_93, %c176, %c0_94] : memref<1x264x64xf32, #tpu.memory_space<vmem>>, vector<1x10x64xf32>
    %186 = vector.shape_cast %185 : vector<1x10x64xf32> to vector<10x64xf32>
    %187 = vector.shape_cast %184 : vector<10x64xf32> to vector<1x10x64xf32>
    tpu.vector_store %arg9[%c0_93, %c176, %c0_94], %187 {strides = array<i32>} : memref<1x264x64xf32, #tpu.memory_space<vmem>>, vector<1x10x64xf32>,
    %c3_95 = arith.constant 3 : index
    %c0_96 = arith.constant 0 : index
    %c0_97 = arith.constant 0 : index
    %188 = vector.load %arg4[%c3_95, %c0_96, %c0_97] : memref<7x10x10xf32, #tpu.memory_space<vmem>>, vector<1x10x10xf32>
    %189 = vector.shape_cast %188 : vector<1x10x10xf32> to vector<10x10xf32>
    %cst_98 = arith.constant dense<0.000000e+00> : vector<10x64xf32>
    %190 = tpu.matmul %189, %184, %cst_98 {dimension_numbers = #tpu.dot_dimension_numbers<[1], [0], [0], [1], [0, 0, 1, 1], [], []>} : vector<10x10xf32>, vector<10x64xf32>, vector<10x64xf32> -> vector<10x64xf32>
    %c4 = arith.constant 4 : index
    %c0_99 = arith.constant 0 : index
    %c0_100 = arith.constant 0 : index
    %191 = vector.load %arg5[%c4, %c0_99, %c0_100] : memref<8x10x1xf32, #tpu.memory_space<vmem>>, vector<1x10x1xf32>
    %192 = vector.shape_cast %191 : vector<1x10x1xf32> to vector<10x1xf32>
    %193 = vector.broadcast %192 : vector<10x1xf32> to vector<10x64xf32>
    %194 = arith.addf %190, %193 : vector<10x64xf32>
    %c0_101 = arith.constant 0 : index
    %c64 = arith.constant 64 : index
    %c0_102 = arith.constant 0 : index
    %195 = vector.load %arg9[%c0_101, %c64, %c0_102] : memref<1x264x64xf32, #tpu.memory_space<vmem>>, vector<1x10x64xf32>
    %196 = vector.shape_cast %195 : vector<1x10x64xf32> to vector<10x64xf32>
    %197 = vector.shape_cast %194 : vector<10x64xf32> to vector<1x10x64xf32>
    tpu.vector_store %arg9[%c0_101, %c64, %c0_102], %197 {strides = array<i32>} : memref<1x264x64xf32, #tpu.memory_space<vmem>>, vector<1x10x64xf32>,
    %c4_103 = arith.constant 4 : index
    %c0_104 = arith.constant 0 : index
    %c0_105 = arith.constant 0 : index
    %198 = vector.load %arg6[%c4_103, %c0_104, %c0_105] : memref<8x10x1xf32, #tpu.memory_space<vmem>>, vector<1x10x1xf32>
    %199 = vector.shape_cast %198 : vector<1x10x1xf32> to vector<10x1xf32>
    %c4_106 = arith.constant 4 : index
    %c0_107 = arith.constant 0 : index
    %c0_108 = arith.constant 0 : index
    %200 = vector.load %arg7[%c4_106, %c0_107, %c0_108] : memref<8x10x1xf32, #tpu.memory_space<vmem>>, vector<1x10x1xf32>
    %201 = vector.shape_cast %200 : vector<1x10x1xf32> to vector<10x1xf32>
    %cst_109 = arith.constant dense<0.000000e+00> : vector<10xf32>
    %202 = vector.multi_reduction <add>, %194, %cst_109 [1] : vector<10x64xf32> to vector<10xf32>
    %203 = vector.shape_cast %202 : vector<10xf32> to vector<10x1xf32>
    %cst_110 = arith.constant 1.562500e-02 : f32
    %204 = vector.broadcast %cst_110 : f32 to vector<10x1xf32>
    %205 = arith.mulf %203, %204 : vector<10x1xf32>
    %206 = vector.broadcast %205 : vector<10x1xf32> to vector<10x64xf32>
    %207 = arith.subf %194, %206 : vector<10x64xf32>
    %208 = arith.mulf %207, %207 : vector<10x64xf32>
    %cst_111 = arith.constant dense<0.000000e+00> : vector<10xf32>
    %209 = vector.multi_reduction <add>, %208, %cst_111 [1] : vector<10x64xf32> to vector<10xf32>
    %210 = vector.shape_cast %209 : vector<10xf32> to vector<10x1xf32>
    %cst_112 = arith.constant 1.562500e-02 : f32
    %211 = vector.broadcast %cst_112 : f32 to vector<10x1xf32>
    %212 = arith.mulf %210, %211 : vector<10x1xf32>
    %cst_113 = arith.constant 9.99999974E-6 : f32
    %213 = vector.broadcast %cst_113 : f32 to vector<10x1xf32>
    %214 = arith.addf %212, %213 : vector<10x1xf32>
    %215 = math.rsqrt %214 : vector<10x1xf32>
    %216 = arith.mulf %199, %215 : vector<10x1xf32>
    %217 = arith.mulf %205, %216 : vector<10x1xf32>
    %218 = arith.subf %201, %217 : vector<10x1xf32>
    %219 = vector.broadcast %216 : vector<10x1xf32> to vector<10x64xf32>
    %220 = arith.mulf %194, %219 : vector<10x64xf32>
    %221 = vector.broadcast %218 : vector<10x1xf32> to vector<10x64xf32>
    %222 = arith.addf %220, %221 : vector<10x64xf32>
    %223 = math.tanh %222 : vector<10x64xf32>
    %c0_114 = arith.constant 0 : index
    %c192 = arith.constant 192 : index
    %c0_115 = arith.constant 0 : index
    %224 = vector.load %arg9[%c0_114, %c192, %c0_115] : memref<1x264x64xf32, #tpu.memory_space<vmem>>, vector<1x10x64xf32>
    %225 = vector.shape_cast %224 : vector<1x10x64xf32> to vector<10x64xf32>
    %226 = vector.shape_cast %223 : vector<10x64xf32> to vector<1x10x64xf32>
    tpu.vector_store %arg9[%c0_114, %c192, %c0_115], %226 {strides = array<i32>} : memref<1x264x64xf32, #tpu.memory_space<vmem>>, vector<1x10x64xf32>,
    %c4_116 = arith.constant 4 : index
    %c0_117 = arith.constant 0 : index
    %c0_118 = arith.constant 0 : index
    %227 = vector.load %arg4[%c4_116, %c0_117, %c0_118] : memref<7x10x10xf32, #tpu.memory_space<vmem>>, vector<1x10x10xf32>
    %228 = vector.shape_cast %227 : vector<1x10x10xf32> to vector<10x10xf32>
    %cst_119 = arith.constant dense<0.000000e+00> : vector<10x64xf32>
    %229 = tpu.matmul %228, %223, %cst_119 {dimension_numbers = #tpu.dot_dimension_numbers<[1], [0], [0], [1], [0, 0, 1, 1], [], []>} : vector<10x10xf32>, vector<10x64xf32>, vector<10x64xf32> -> vector<10x64xf32>
    %c5 = arith.constant 5 : index
    %c0_120 = arith.constant 0 : index
    %c0_121 = arith.constant 0 : index
    %230 = vector.load %arg5[%c5, %c0_120, %c0_121] : memref<8x10x1xf32, #tpu.memory_space<vmem>>, vector<1x10x1xf32>
    %231 = vector.shape_cast %230 : vector<1x10x1xf32> to vector<10x1xf32>
    %232 = vector.broadcast %231 : vector<10x1xf32> to vector<10x64xf32>
    %233 = arith.addf %229, %232 : vector<10x64xf32>
    %c0_122 = arith.constant 0 : index
    %c80 = arith.constant 80 : index
    %c0_123 = arith.constant 0 : index
    %234 = vector.load %arg9[%c0_122, %c80, %c0_123] : memref<1x264x64xf32, #tpu.memory_space<vmem>>, vector<1x10x64xf32>
    %235 = vector.shape_cast %234 : vector<1x10x64xf32> to vector<10x64xf32>
    %236 = vector.shape_cast %233 : vector<10x64xf32> to vector<1x10x64xf32>
    tpu.vector_store %arg9[%c0_122, %c80, %c0_123], %236 {strides = array<i32>} : memref<1x264x64xf32, #tpu.memory_space<vmem>>, vector<1x10x64xf32>,
    %c5_124 = arith.constant 5 : index
    %c0_125 = arith.constant 0 : index
    %c0_126 = arith.constant 0 : index
    %237 = vector.load %arg6[%c5_124, %c0_125, %c0_126] : memref<8x10x1xf32, #tpu.memory_space<vmem>>, vector<1x10x1xf32>
    %238 = vector.shape_cast %237 : vector<1x10x1xf32> to vector<10x1xf32>
    %c5_127 = arith.constant 5 : index
    %c0_128 = arith.constant 0 : index
    %c0_129 = arith.constant 0 : index
    %239 = vector.load %arg7[%c5_127, %c0_128, %c0_129] : memref<8x10x1xf32, #tpu.memory_space<vmem>>, vector<1x10x1xf32>
    %240 = vector.shape_cast %239 : vector<1x10x1xf32> to vector<10x1xf32>
    %cst_130 = arith.constant dense<0.000000e+00> : vector<10xf32>
    %241 = vector.multi_reduction <add>, %233, %cst_130 [1] : vector<10x64xf32> to vector<10xf32>
    %242 = vector.shape_cast %241 : vector<10xf32> to vector<10x1xf32>
    %cst_131 = arith.constant 1.562500e-02 : f32
    %243 = vector.broadcast %cst_131 : f32 to vector<10x1xf32>
    %244 = arith.mulf %242, %243 : vector<10x1xf32>
    %245 = vector.broadcast %244 : vector<10x1xf32> to vector<10x64xf32>
    %246 = arith.subf %233, %245 : vector<10x64xf32>
    %247 = arith.mulf %246, %246 : vector<10x64xf32>
    %cst_132 = arith.constant dense<0.000000e+00> : vector<10xf32>
    %248 = vector.multi_reduction <add>, %247, %cst_132 [1] : vector<10x64xf32> to vector<10xf32>
    %249 = vector.shape_cast %248 : vector<10xf32> to vector<10x1xf32>
    %cst_133 = arith.constant 1.562500e-02 : f32
    %250 = vector.broadcast %cst_133 : f32 to vector<10x1xf32>
    %251 = arith.mulf %249, %250 : vector<10x1xf32>
    %cst_134 = arith.constant 9.99999974E-6 : f32
    %252 = vector.broadcast %cst_134 : f32 to vector<10x1xf32>
    %253 = arith.addf %251, %252 : vector<10x1xf32>
    %254 = math.rsqrt %253 : vector<10x1xf32>
    %255 = arith.mulf %238, %254 : vector<10x1xf32>
    %256 = arith.mulf %244, %255 : vector<10x1xf32>
    %257 = arith.subf %240, %256 : vector<10x1xf32>
    %258 = vector.broadcast %255 : vector<10x1xf32> to vector<10x64xf32>
    %259 = arith.mulf %233, %258 : vector<10x64xf32>
    %260 = vector.broadcast %257 : vector<10x1xf32> to vector<10x64xf32>
    %261 = arith.addf %259, %260 : vector<10x64xf32>
    %262 = math.tanh %261 : vector<10x64xf32>
    %c0_135 = arith.constant 0 : index
    %c208 = arith.constant 208 : index
    %c0_136 = arith.constant 0 : index
    %263 = vector.load %arg9[%c0_135, %c208, %c0_136] : memref<1x264x64xf32, #tpu.memory_space<vmem>>, vector<1x10x64xf32>
    %264 = vector.shape_cast %263 : vector<1x10x64xf32> to vector<10x64xf32>
    %265 = vector.shape_cast %262 : vector<10x64xf32> to vector<1x10x64xf32>
    tpu.vector_store %arg9[%c0_135, %c208, %c0_136], %265 {strides = array<i32>} : memref<1x264x64xf32, #tpu.memory_space<vmem>>, vector<1x10x64xf32>,
    %c5_137 = arith.constant 5 : index
    %c0_138 = arith.constant 0 : index
    %c0_139 = arith.constant 0 : index
    %266 = vector.load %arg4[%c5_137, %c0_138, %c0_139] : memref<7x10x10xf32, #tpu.memory_space<vmem>>, vector<1x10x10xf32>
    %267 = vector.shape_cast %266 : vector<1x10x10xf32> to vector<10x10xf32>
    %cst_140 = arith.constant dense<0.000000e+00> : vector<10x64xf32>
    %268 = tpu.matmul %267, %262, %cst_140 {dimension_numbers = #tpu.dot_dimension_numbers<[1], [0], [0], [1], [0, 0, 1, 1], [], []>} : vector<10x10xf32>, vector<10x64xf32>, vector<10x64xf32> -> vector<10x64xf32>
    %c6 = arith.constant 6 : index
    %c0_141 = arith.constant 0 : index
    %c0_142 = arith.constant 0 : index
    %269 = vector.load %arg5[%c6, %c0_141, %c0_142] : memref<8x10x1xf32, #tpu.memory_space<vmem>>, vector<1x10x1xf32>
    %270 = vector.shape_cast %269 : vector<1x10x1xf32> to vector<10x1xf32>
    %271 = vector.broadcast %270 : vector<10x1xf32> to vector<10x64xf32>
    %272 = arith.addf %268, %271 : vector<10x64xf32>
    %c0_143 = arith.constant 0 : index
    %c96 = arith.constant 96 : index
    %c0_144 = arith.constant 0 : index
    %273 = vector.load %arg9[%c0_143, %c96, %c0_144] : memref<1x264x64xf32, #tpu.memory_space<vmem>>, vector<1x10x64xf32>
    %274 = vector.shape_cast %273 : vector<1x10x64xf32> to vector<10x64xf32>
    %275 = vector.shape_cast %272 : vector<10x64xf32> to vector<1x10x64xf32>
    tpu.vector_store %arg9[%c0_143, %c96, %c0_144], %275 {strides = array<i32>} : memref<1x264x64xf32, #tpu.memory_space<vmem>>, vector<1x10x64xf32>,
    %c6_145 = arith.constant 6 : index
    %c0_146 = arith.constant 0 : index
    %c0_147 = arith.constant 0 : index
    %276 = vector.load %arg6[%c6_145, %c0_146, %c0_147] : memref<8x10x1xf32, #tpu.memory_space<vmem>>, vector<1x10x1xf32>
    %277 = vector.shape_cast %276 : vector<1x10x1xf32> to vector<10x1xf32>
    %c6_148 = arith.constant 6 : index
    %c0_149 = arith.constant 0 : index
    %c0_150 = arith.constant 0 : index
    %278 = vector.load %arg7[%c6_148, %c0_149, %c0_150] : memref<8x10x1xf32, #tpu.memory_space<vmem>>, vector<1x10x1xf32>
    %279 = vector.shape_cast %278 : vector<1x10x1xf32> to vector<10x1xf32>
    %cst_151 = arith.constant dense<0.000000e+00> : vector<10xf32>
    %280 = vector.multi_reduction <add>, %272, %cst_151 [1] : vector<10x64xf32> to vector<10xf32>
    %281 = vector.shape_cast %280 : vector<10xf32> to vector<10x1xf32>
    %cst_152 = arith.constant 1.562500e-02 : f32
    %282 = vector.broadcast %cst_152 : f32 to vector<10x1xf32>
    %283 = arith.mulf %281, %282 : vector<10x1xf32>
    %284 = vector.broadcast %283 : vector<10x1xf32> to vector<10x64xf32>
    %285 = arith.subf %272, %284 : vector<10x64xf32>
    %286 = arith.mulf %285, %285 : vector<10x64xf32>
    %cst_153 = arith.constant dense<0.000000e+00> : vector<10xf32>
    %287 = vector.multi_reduction <add>, %286, %cst_153 [1] : vector<10x64xf32> to vector<10xf32>
    %288 = vector.shape_cast %287 : vector<10xf32> to vector<10x1xf32>
    %cst_154 = arith.constant 1.562500e-02 : f32
    %289 = vector.broadcast %cst_154 : f32 to vector<10x1xf32>
    %290 = arith.mulf %288, %289 : vector<10x1xf32>
    %cst_155 = arith.constant 9.99999974E-6 : f32
    %291 = vector.broadcast %cst_155 : f32 to vector<10x1xf32>
    %292 = arith.addf %290, %291 : vector<10x1xf32>
    %293 = math.rsqrt %292 : vector<10x1xf32>
    %294 = arith.mulf %277, %293 : vector<10x1xf32>
    %295 = arith.mulf %283, %294 : vector<10x1xf32>
    %296 = arith.subf %279, %295 : vector<10x1xf32>
    %297 = vector.broadcast %294 : vector<10x1xf32> to vector<10x64xf32>
    %298 = arith.mulf %272, %297 : vector<10x64xf32>
    %299 = vector.broadcast %296 : vector<10x1xf32> to vector<10x64xf32>
    %300 = arith.addf %298, %299 : vector<10x64xf32>
    %301 = math.tanh %300 : vector<10x64xf32>
    %c0_156 = arith.constant 0 : index
    %c224 = arith.constant 224 : index
    %c0_157 = arith.constant 0 : index
    %302 = vector.load %arg9[%c0_156, %c224, %c0_157] : memref<1x264x64xf32, #tpu.memory_space<vmem>>, vector<1x10x64xf32>
    %303 = vector.shape_cast %302 : vector<1x10x64xf32> to vector<10x64xf32>
    %304 = vector.shape_cast %301 : vector<10x64xf32> to vector<1x10x64xf32>
    tpu.vector_store %arg9[%c0_156, %c224, %c0_157], %304 {strides = array<i32>} : memref<1x264x64xf32, #tpu.memory_space<vmem>>, vector<1x10x64xf32>,
    %c6_158 = arith.constant 6 : index
    %c0_159 = arith.constant 0 : index
    %c0_160 = arith.constant 0 : index
    %305 = vector.load %arg4[%c6_158, %c0_159, %c0_160] : memref<7x10x10xf32, #tpu.memory_space<vmem>>, vector<1x10x10xf32>
    %306 = vector.shape_cast %305 : vector<1x10x10xf32> to vector<10x10xf32>
    %cst_161 = arith.constant dense<0.000000e+00> : vector<10x64xf32>
    %307 = tpu.matmul %306, %301, %cst_161 {dimension_numbers = #tpu.dot_dimension_numbers<[1], [0], [0], [1], [0, 0, 1, 1], [], []>} : vector<10x10xf32>, vector<10x64xf32>, vector<10x64xf32> -> vector<10x64xf32>
    %c7 = arith.constant 7 : index
    %c0_162 = arith.constant 0 : index
    %c0_163 = arith.constant 0 : index
    %308 = vector.load %arg5[%c7, %c0_162, %c0_163] : memref<8x10x1xf32, #tpu.memory_space<vmem>>, vector<1x10x1xf32>
    %309 = vector.shape_cast %308 : vector<1x10x1xf32> to vector<10x1xf32>
    %310 = vector.broadcast %309 : vector<10x1xf32> to vector<10x64xf32>
    %311 = arith.addf %307, %310 : vector<10x64xf32>
    %c0_164 = arith.constant 0 : index
    %c112 = arith.constant 112 : index
    %c0_165 = arith.constant 0 : index
    %312 = vector.load %arg9[%c0_164, %c112, %c0_165] : memref<1x264x64xf32, #tpu.memory_space<vmem>>, vector<1x10x64xf32>
    %313 = vector.shape_cast %312 : vector<1x10x64xf32> to vector<10x64xf32>
    %314 = vector.shape_cast %311 : vector<10x64xf32> to vector<1x10x64xf32>
    tpu.vector_store %arg9[%c0_164, %c112, %c0_165], %314 {strides = array<i32>} : memref<1x264x64xf32, #tpu.memory_space<vmem>>, vector<1x10x64xf32>,
    %c7_166 = arith.constant 7 : index
    %c0_167 = arith.constant 0 : index
    %c0_168 = arith.constant 0 : index
    %315 = vector.load %arg6[%c7_166, %c0_167, %c0_168] : memref<8x10x1xf32, #tpu.memory_space<vmem>>, vector<1x10x1xf32>
    %316 = vector.shape_cast %315 : vector<1x10x1xf32> to vector<10x1xf32>
    %c7_169 = arith.constant 7 : index
    %c0_170 = arith.constant 0 : index
    %c0_171 = arith.constant 0 : index
    %317 = vector.load %arg7[%c7_169, %c0_170, %c0_171] : memref<8x10x1xf32, #tpu.memory_space<vmem>>, vector<1x10x1xf32>
    %318 = vector.shape_cast %317 : vector<1x10x1xf32> to vector<10x1xf32>
    %cst_172 = arith.constant dense<0.000000e+00> : vector<10xf32>
    %319 = vector.multi_reduction <add>, %311, %cst_172 [1] : vector<10x64xf32> to vector<10xf32>
    %320 = vector.shape_cast %319 : vector<10xf32> to vector<10x1xf32>
    %cst_173 = arith.constant 1.562500e-02 : f32
    %321 = vector.broadcast %cst_173 : f32 to vector<10x1xf32>
    %322 = arith.mulf %320, %321 : vector<10x1xf32>
    %323 = vector.broadcast %322 : vector<10x1xf32> to vector<10x64xf32>
    %324 = arith.subf %311, %323 : vector<10x64xf32>
    %325 = arith.mulf %324, %324 : vector<10x64xf32>
    %cst_174 = arith.constant dense<0.000000e+00> : vector<10xf32>
    %326 = vector.multi_reduction <add>, %325, %cst_174 [1] : vector<10x64xf32> to vector<10xf32>
    %327 = vector.shape_cast %326 : vector<10xf32> to vector<10x1xf32>
    %cst_175 = arith.constant 1.562500e-02 : f32
    %328 = vector.broadcast %cst_175 : f32 to vector<10x1xf32>
    %329 = arith.mulf %327, %328 : vector<10x1xf32>
    %cst_176 = arith.constant 9.99999974E-6 : f32
    %330 = vector.broadcast %cst_176 : f32 to vector<10x1xf32>
    %331 = arith.addf %329, %330 : vector<10x1xf32>
    %332 = math.rsqrt %331 : vector<10x1xf32>
    %333 = arith.mulf %316, %332 : vector<10x1xf32>
    %334 = arith.mulf %322, %333 : vector<10x1xf32>
    %335 = arith.subf %318, %334 : vector<10x1xf32>
    %336 = vector.broadcast %333 : vector<10x1xf32> to vector<10x64xf32>
    %337 = arith.mulf %311, %336 : vector<10x64xf32>
    %338 = vector.broadcast %335 : vector<10x1xf32> to vector<10x64xf32>
    %339 = arith.addf %337, %338 : vector<10x64xf32>
    %340 = math.tanh %339 : vector<10x64xf32>
    %c0_177 = arith.constant 0 : index
    %c240 = arith.constant 240 : index
    %c0_178 = arith.constant 0 : index
    %341 = vector.load %arg9[%c0_177, %c240, %c0_178] : memref<1x264x64xf32, #tpu.memory_space<vmem>>, vector<1x10x64xf32>
    %342 = vector.shape_cast %341 : vector<1x10x64xf32> to vector<10x64xf32>
    %343 = vector.shape_cast %340 : vector<10x64xf32> to vector<1x10x64xf32>
    tpu.vector_store %arg9[%c0_177, %c240, %c0_178], %343 {strides = array<i32>} : memref<1x264x64xf32, #tpu.memory_space<vmem>>, vector<1x10x64xf32>,
    %c0_179 = arith.constant 0 : index
    %c0_180 = arith.constant 0 : index
    %344 = vector.load %arg8[%c0_179, %c0_180] : memref<10x1xf32, #tpu.memory_space<vmem>>, vector<10x1xf32>
    %345 = vector.broadcast %344 : vector<10x1xf32> to vector<10x64xf32>
    %346 = arith.mulf %345, %340 : vector<10x64xf32>
    %cst_181 = arith.constant dense<0.000000e+00> : vector<64xf32>
    %347 = vector.multi_reduction <add>, %346, %cst_181 [0] : vector<10x64xf32> to vector<64xf32>
    %348 = vector.shape_cast %347 : vector<64xf32> to vector<1x64xf32>
    %349 = vector.broadcast %2 : f32 to vector<1x64xf32>
    %350 = arith.addf %348, %349 : vector<1x64xf32>
    %c0_182 = arith.constant 0 : index
    %c257 = arith.constant 257 : index
    %c0_183 = arith.constant 0 : index
    %351 = vector.load %arg9[%c0_182, %c257, %c0_183] : memref<1x264x64xf32, #tpu.memory_space<vmem>>, vector<1x1x64xf32>
    %352 = vector.shape_cast %351 : vector<1x1x64xf32> to vector<1x64xf32>
    %353 = vector.shape_cast %350 : vector<1x64xf32> to vector<1x1x64xf32>
    tpu.vector_store %arg9[%c0_182, %c257, %c0_183], %353 {strides = array<i32>} : memref<1x264x64xf32, #tpu.memory_space<vmem>>, vector<1x1x64xf32>,
    return
  }
  func.func @transform_0(%arg0: i32) -> i32 {
    %c0_i32 = arith.constant 0 : i32
    %c0_i32_0 = arith.constant 0 : i32
    return %c0_i32 : i32
  }
  func.func @transform_1(%arg0: i32) -> (i32, i32, i32) {
    %c0_i32 = arith.constant 0 : i32
    %c0_i32_0 = arith.constant 0 : i32
    %c0_i32_1 = arith.constant 0 : i32
    return %arg0, %c0_i32, %c0_i32_0 : i32, i32, i32
  }
  func.func @transform_2(%arg0: i32) -> (i32, i32) {
    %c0_i32 = arith.constant 0 : i32
    %c0_i32_0 = arith.constant 0 : i32
    %c0_i32_1 = arith.constant 0 : i32
    return %c0_i32, %c0_i32_0 : i32, i32
  }
  func.func @transform_3(%arg0: i32) -> (i32, i32, i32) {
    %c0_i32 = arith.constant 0 : i32
    %c0_i32_0 = arith.constant 0 : i32
    %c0_i32_1 = arith.constant 0 : i32
    %c0_i32_2 = arith.constant 0 : i32
    return %c0_i32, %c0_i32_0, %c0_i32_1 : i32, i32, i32
  }
  func.func @transform_4(%arg0: i32) -> (i32, i32, i32) {
    %c0_i32 = arith.constant 0 : i32
    %c0_i32_0 = arith.constant 0 : i32
    %c0_i32_1 = arith.constant 0 : i32
    %c0_i32_2 = arith.constant 0 : i32
    return %c0_i32, %c0_i32_0, %c0_i32_1 : i32, i32, i32
  }
  func.func @transform_5(%arg0: i32) -> (i32, i32, i32) {
    %c0_i32 = arith.constant 0 : i32
    %c0_i32_0 = arith.constant 0 : i32
    %c0_i32_1 = arith.constant 0 : i32
    %c0_i32_2 = arith.constant 0 : i32
    return %c0_i32, %c0_i32_0, %c0_i32_1 : i32, i32, i32
  }
  func.func @transform_6(%arg0: i32) -> (i32, i32, i32) {
    %c0_i32 = arith.constant 0 : i32
    %c0_i32_0 = arith.constant 0 : i32
    %c0_i32_1 = arith.constant 0 : i32
    %c0_i32_2 = arith.constant 0 : i32
    return %c0_i32, %c0_i32_0, %c0_i32_1 : i32, i32, i32
  }
  func.func @transform_7(%arg0: i32) -> (i32, i32) {
    %c0_i32 = arith.constant 0 : i32
    %c0_i32_0 = arith.constant 0 : i32
    %c0_i32_1 = arith.constant 0 : i32
    return %c0_i32, %c0_i32_0 : i32, i32
  }
  func.func @transform_8(%arg0: i32) -> (i32, i32, i32) {
    %c0_i32 = arith.constant 0 : i32
    %c0_i32_0 = arith.constant 0 : i32
    %c0_i32_1 = arith.constant 0 : i32
    return %arg0, %c0_i32, %c0_i32_0 : i32, i32, i32
  }
}

</mosaic_0001>

<llo_original>
// kernel: tpu_custom_call.1
$region0: #{tpu_custom_call.1}
  #allocation0 [shape = 'u32[]', space=smem, size = 0x4, offset = 0x4, fixed_abs, tag = 'smem constant byte address 0x4 - core index']
  #allocation1 [shape = 'u32[72,128]{1,0:T(1,128)}', space=vmem, size = 0x9000, scoped, tag = 'internal scratch']
  %s0 = inlined_call_operand.vmem [shape: f32[3], index: 0, kind: input, shape index: {}]
  %s1 = inlined_call_operand.vmem [shape: f32[1,1,64], index: 1, kind: input, shape index: {}]
  %s2 = inlined_call_operand.vmem [shape: f32[10,1], index: 2, kind: input, shape index: {}]
  %s3 = inlined_call_operand.vmem [shape: f32[7,10,10], index: 3, kind: input, shape index: {}]
  %s4 = inlined_call_operand.vmem [shape: f32[8,10,1], index: 4, kind: input, shape index: {}]
  %s5 = inlined_call_operand.vmem [shape: f32[8,10,1], index: 5, kind: input, shape index: {}]
  %s6 = inlined_call_operand.vmem [shape: f32[8,10,1], index: 6, kind: input, shape index: {}]
  %s7 = inlined_call_operand.vmem [shape: f32[10,1], index: 7, kind: input, shape index: {}]
  %s8 = inlined_call_operand.vmem [shape: f32[1,264,64], index: 8, kind: output, shape index: {}]
  %s9 = sld [smem:[#allocation0]]
  $region46: #{tpu_custom_call.1} parent=0
    _
  %s11 = ssub.s32 1, %s9
  %s12 = scalar_select 0, %s11, %s9
  $region1: #{tpu_custom_call.1} parent=0
    #allocation2 [shape = 'u8[512]{0}', space=smem, size = 0x200, scoped, tag = 'input window, operand 0, single buffered']
    #allocation3 [shape = 's32[1]{0}', space=sflag, size = 0x4, scoped, tag = 'scoped memory for tpu_custom_call.1']
    %13 = vsyncpa [#allocation3], 0
    // Predicated region
    $region2: #{tpu_custom_call.1} parent=1 // pred_check
      _
    $region3: #{tpu_custom_call.1} parent=1 // pred_check_branch
      %15 = sbr.rel (0) target = $region5
    $region4: #{tpu_custom_call.1} parent=1 // pred_region
      %17 = vsyncadd [#allocation3], 0
      %s19 = sshll.u32 %s0, 4
      %s20 = int_to_ptr.vmem [resolvable:$true] %s19
      %22 = dma.vmem_to_smem %s20, 16, [#allocation2], [#allocation3]
    $region5: #{tpu_custom_call.1} parent=1 // pred_fallthru
      _
    // Predicated region
    $region6: #{tpu_custom_call.1} parent=1 // pred_check
      _
    $region7: #{tpu_custom_call.1} parent=1 // pred_check_branch
      %24 = sbr.rel (0) target = $region9
    $region8: #{tpu_custom_call.1} parent=1 // pred_region
      _
    $region9: #{tpu_custom_call.1} parent=1 // pred_fallthru
      _
    // Predicated region
    $region10: #{tpu_custom_call.1} parent=1 // pred_check
      _
    $region11: #{tpu_custom_call.1} parent=1 // pred_check_branch
      %26 = sbr.rel (0) target = $region13
    $region12: #{tpu_custom_call.1} parent=1 // pred_region
      _
    $region13: #{tpu_custom_call.1} parent=1 // pred_fallthru
      _
    // Predicated region
    $region14: #{tpu_custom_call.1} parent=1 // pred_check
      _
    $region15: #{tpu_custom_call.1} parent=1 // pred_check_branch
      %28 = sbr.rel (0) target = $region17
    $region16: #{tpu_custom_call.1} parent=1 // pred_region
      _
    $region17: #{tpu_custom_call.1} parent=1 // pred_fallthru
      _
    // Predicated region
    $region18: #{tpu_custom_call.1} parent=1 // pred_check
      _
    $region19: #{tpu_custom_call.1} parent=1 // pred_check_branch
      %30 = sbr.rel (0) target = $region21
    $region20: #{tpu_custom_call.1} parent=1 // pred_region
      _
    $region21: #{tpu_custom_call.1} parent=1 // pred_fallthru
      _
    // Predicated region
    $region22: #{tpu_custom_call.1} parent=1 // pred_check
      _
    $region23: #{tpu_custom_call.1} parent=1 // pred_check_branch
      %32 = sbr.rel (0) target = $region25
    $region24: #{tpu_custom_call.1} parent=1 // pred_region
      _
    $region25: #{tpu_custom_call.1} parent=1 // pred_fallthru
      _
    // Predicated region
    $region26: #{tpu_custom_call.1} parent=1 // pred_check
      _
    $region27: #{tpu_custom_call.1} parent=1 // pred_check_branch
      %34 = sbr.rel (0) target = $region29
    $region28: #{tpu_custom_call.1} parent=1 // pred_region
      _
    $region29: #{tpu_custom_call.1} parent=1 // pred_fallthru
      _
    // Predicated region
    $region30: #{tpu_custom_call.1} parent=1 // pred_check
      _
    $region31: #{tpu_custom_call.1} parent=1 // pred_check_branch
      %36 = sbr.rel (0) target = $region33
    $region32: #{tpu_custom_call.1} parent=1 // pred_region
      _
    $region33: #{tpu_custom_call.1} parent=1 // pred_fallthru
      _
    // Predicated region
    $region34: #{tpu_custom_call.1} parent=1 // pred_check
      _
    $region35: #{tpu_custom_call.1} parent=1 // pred_check_branch
      %38 = sbr.rel (0) target = $region37
    $region36: #{tpu_custom_call.1} parent=1 // pred_region
      %40 = dma.done [#allocation3], 16
    $region37: #{tpu_custom_call.1} parent=1 // pred_fallthru
      _
    %41 = sfence
    %s42 = sld [smem:[#allocation2]]
    %s43 = sld [smem:[#allocation2 + $0x1]]
    %s44 = sld [smem:[#allocation2 + $0x2]]
    %v45 = vld [vmem:[%s1] sm:$0x1]
    %vm46 = vcmask 516096
    %v47 = vsel %vm46, %v45, 0.0
    %48 = vadd.xlane.f32.xlu0 %v47
    %v49 = vpop.xlane.xlu0 %48
    %v50 = vmul.f32 %v49, 0.015625
    %v51 = vsub.f32 %v45, %v50
    %v52 = vmul.f32 %v51, %v51
    %v53 = vsel %vm46, %v52, 0.0
    %54 = vadd.xlane.f32.xlu0 %v53
    %v55 = vpop.xlane.xlu0 %54
    %v56 = vmul.f32 %v55, 0.015625
    %v57 = vadd.f32 %v56, 1e-05
    %v58 = vrsqrt.pop %v57
    %v59 = vmul.f32 %v58, %v57
    %v60 = vmul.f32 %v59, %v58
    %v61 = vmul.f32 0.5, %v60
    %v62 = vsub.f32 1.5, %v61
    %v63 = vmul.f32 %v58, %v62
    %vm64 = vweird.f32 %v57
    %vm65 = vweird.f32 %v58
    %vm66 = vmor %vm64, %vm65
    %v67 = vsel %vm66, %v58, %v63
    %v68 = vstv %s42
    %v69 = vmul.f32 %v68, %v67
    %v70 = vmul.f32 %v50, %v69
    %v71 = vstv %s43
    %v72 = vsub.f32 %v71, %v70
    %v73 = vmul.f32 %v45, %v69
    %v74 = vadd.f32 %v73, %v72
    %75 = vst.msk [vmem:[%s8 + $0x100] sm:$0x1] %vm46, %v74
    %v76 = vld [vmem:[%s2] sm:$0xff]
    %v77 = vld [vmem:[%s2 + $0x8] sm:$0x3]
    %79 = vset.pattern.permute.xlu0 0
    %80 = vperm.xlu0 %79, %v76
    %v81 = vpop.permute.xlu0 %80
    %84 = vset.pattern.permute.xlu0 0
    %85 = vperm.xlu0 %84, %v77
    %v86 = vpop.permute.xlu0 %85
    %v89 = vperm.slane %v74, 0
    %v91 = vmul.f32 %v81, %v89
    %v92 = vmul.f32 %v86, %v89
    %v93 = vld [vmem:[%s4] sm:$0xff]
    %v94 = vld [vmem:[%s4 + $0x8] sm:$0x3]
    %96 = vset.pattern.permute.xlu0 0
    %97 = vperm.xlu0 %96, %v93
    %v98 = vpop.permute.xlu0 %97
    %101 = vset.pattern.permute.xlu0 0
    %102 = vperm.xlu0 %101, %v94
    %v103 = vpop.permute.xlu0 %102
    %v105 = vadd.f32 %v91, %v98
    %v106 = vadd.f32 %v92, %v103
    %vm107 = vcmask 523264
    %108 = vst.msk [vmem:[%s8] sm:$0xff] %vm107, %v105
    %vm109 = vcmask 517120
    %110 = vst.msk [vmem:[%s8 + $0x8] sm:$0x3] %vm109, %v106
    %v111 = vld [vmem:[%s5] sm:$0xff]
    %v112 = vld [vmem:[%s5 + $0x8] sm:$0x3]
    %v113 = vld [vmem:[%s6] sm:$0xff]
    %v114 = vld [vmem:[%s6 + $0x8] sm:$0x3]
    %v115 = vsel %vm107, %v105, 0.0
    %116 = vadd.xlane.f32.xlu0 %v115
    %v117 = vpop.xlane.xlu0 %116
    %v118 = vsel %vm109, %v106, 0.0
    %119 = vadd.xlane.f32.xlu0 %v118
    %v120 = vpop.xlane.xlu0 %119
    %v121 = vmul.f32 %v117, 0.015625
    %v122 = vmul.f32 %v120, 0.015625
    %v123 = vsub.f32 %v105, %v121
    %v124 = vsub.f32 %v106, %v122
    %v125 = vmul.f32 %v123, %v123
    %v126 = vmul.f32 %v124, %v124
    %v127 = vsel %vm107, %v125, 0.0
    %128 = vadd.xlane.f32.xlu0 %v127
    %v129 = vpop.xlane.xlu0 %128
    %v130 = vsel %vm109, %v126, 0.0
    %131 = vadd.xlane.f32.xlu0 %v130
    %v132 = vpop.xlane.xlu0 %131
    %v133 = vmul.f32 %v129, 0.015625
    %v134 = vmul.f32 %v132, 0.015625
    %v135 = vadd.f32 %v133, 1e-05
    %v136 = vadd.f32 %v134, 1e-05
    %v137 = vrsqrt.pop %v135
    %v138 = vmul.f32 %v137, %v135
    %v139 = vmul.f32 %v138, %v137
    %v140 = vmul.f32 0.5, %v139
    %v141 = vsub.f32 1.5, %v140
    %v142 = vmul.f32 %v137, %v141
    %vm143 = vweird.f32 %v135
    %vm144 = vweird.f32 %v137
    %vm145 = vmor %vm143, %vm144
    %v146 = vsel %vm145, %v137, %v142
    %v147 = vrsqrt.pop %v136
    %v148 = vmul.f32 %v147, %v136
    %v149 = vmul.f32 %v148, %v147
    %v150 = vmul.f32 0.5, %v149
    %v151 = vsub.f32 1.5, %v150
    %v152 = vmul.f32 %v147, %v151
    %vm153 = vweird.f32 %v136
    %vm154 = vweird.f32 %v147
    %vm155 = vmor %vm153, %vm154
    %v156 = vsel %vm155, %v147, %v152
    %v157 = vmul.f32 %v111, %v146
    %v158 = vmul.f32 %v112, %v156
    %v159 = vmul.f32 %v121, %v157
    %v160 = vmul.f32 %v122, %v158
    %v161 = vsub.f32 %v113, %v159
    %v162 = vsub.f32 %v114, %v160
    %164 = vset.pattern.permute.xlu0 0
    %165 = vperm.xlu0 %164, %v157
    %v166 = vpop.permute.xlu0 %165
    %169 = vset.pattern.permute.xlu0 0
    %170 = vperm.xlu0 %169, %v158
    %v171 = vpop.permute.xlu0 %170
    %v173 = vmul.f32 %v105, %v166
    %v174 = vmul.f32 %v106, %v171
    %176 = vset.pattern.permute.xlu0 0
    %177 = vperm.xlu0 %176, %v161
    %v178 = vpop.permute.xlu0 %177
    %181 = vset.pattern.permute.xlu0 0
    %182 = vperm.xlu0 %181, %v162
    %v183 = vpop.permute.xlu0 %182
    %v185 = vadd.f32 %v173, %v178
    %v186 = vadd.f32 %v174, %v183
    %v187 = vtanh.pop %v185
    %v188 = vtanh.pop %v186
    %189 = vst.msk [vmem:[%s8 + $0x80] sm:$0xff] %vm107, %v187
    %190 = vst.msk [vmem:[%s8 + $0x88] sm:$0x3] %vm109, %v188
    %v191 = vld [vmem:[%s3] sm:$0xff]
    %v192 = vld [vmem:[%s3 + $0x8] sm:$0x3]
    %s193 = scalar_lea.vmem %s4, 16
    %v194 = vld [vmem:[%s193] sm:$0xff]
    %v195 = vld [vmem:[%s193 + $0x8] sm:$0x3]
    %197 = vset.pattern.permute.xlu0 0
    %198 = vperm.xlu0 %197, %v194
    %v199 = vpop.permute.xlu0 %198
    %202 = vset.pattern.permute.xlu0 0
    %203 = vperm.xlu0 %202, %v195
    %v204 = vpop.permute.xlu0 %203
    %vm206 = vcmask 80896
    %v208 = vsel %vm206, %v191, 0
    %v211 = vsel %vm206, %v192, 0
    %vm213 = vcmask 1041408
    %v215 = vsel %vm213, %v188, 0
    %217 = vmatpush.msra.mxu0 0.0
    %218 = vmatpush.msra.mxu0 0.0
    %219 = vmatpush.msra.mxu0 0.0
    %220 = vmatpush.msra.mxu0 0.0
    %221 = vmatpush.msra.mxu0 0.0
    %222 = vmatpush.msra.mxu0 0.0
    %223 = vmatpush.msra.mxu0 0.0
    %224 = vmatpush.msra.mxu0 0.0
    %225 = vmatpush.msra.mxu0 0.0
    %226 = vmatpush.msra.mxu0 0.0
    %227 = vmatpush.msra.mxu0 0.0
    %228 = vmatpush.msra.mxu0 0.0
    %229 = vmatpush.msra.mxu0 0.0
    %230 = vmatpush.msra.mxu0 0.0
    %231 = vmatpush.msra.mxu0 %v215
    %232 = vmatpush.msra.mxu0 %v187
    %233 = vmatmul.f32.gmra.mxu0 %v208
    %v234 = vpop.f32.mrf.mxu0
    %v235 = vadd.f32 %v199, %v234
    %236 = vmatmul.f32.gmra.mxu0 %v211
    %v237 = vpop.f32.mrf.mxu0
    %v238 = vadd.f32 %v204, %v237
    %239 = vdwg.mxu0
    %240 = vst.msk [vmem:[%s8 + $0x10] sm:$0xff] %vm107, %v235
    %241 = vst.msk [vmem:[%s8 + $0x18] sm:$0x3] %vm109, %v238
    %s242 = scalar_lea.vmem %s5, 16
    %v243 = vld [vmem:[%s242] sm:$0xff]
    %v244 = vld [vmem:[%s242 + $0x8] sm:$0x3]
    %s245 = scalar_lea.vmem %s6, 16
    %v246 = vld [vmem:[%s245] sm:$0xff]
    %v247 = vld [vmem:[%s245 + $0x8] sm:$0x3]
    %v248 = vsel %vm107, %v235, 0.0
    %249 = vadd.xlane.f32.xlu0 %v248
    %v250 = vpop.xlane.xlu0 %249
    %v251 = vsel %vm109, %v238, 0.0
    %252 = vadd.xlane.f32.xlu0 %v251
    %v253 = vpop.xlane.xlu0 %252
    %v254 = vmul.f32 %v250, 0.015625
    %v255 = vmul.f32 %v253, 0.015625
    %v256 = vsub.f32 %v235, %v254
    %v257 = vsub.f32 %v238, %v255
    %v258 = vmul.f32 %v256, %v256
    %v259 = vmul.f32 %v257, %v257
    %v260 = vsel %vm107, %v258, 0.0
    %261 = vadd.xlane.f32.xlu0 %v260
    %v262 = vpop.xlane.xlu0 %261
    %v263 = vsel %vm109, %v259, 0.0
    %264 = vadd.xlane.f32.xlu0 %v263
    %v265 = vpop.xlane.xlu0 %264
    %v266 = vmul.f32 %v262, 0.015625
    %v267 = vmul.f32 %v265, 0.015625
    %v268 = vadd.f32 %v266, 1e-05
    %v269 = vadd.f32 %v267, 1e-05
    %v270 = vrsqrt.pop %v268
    %v271 = vmul.f32 %v270, %v268
    %v272 = vmul.f32 %v271, %v270
    %v273 = vmul.f32 0.5, %v272
    %v274 = vsub.f32 1.5, %v273
    %v275 = vmul.f32 %v270, %v274
    %vm276 = vweird.f32 %v268
    %vm277 = vweird.f32 %v270
    %vm278 = vmor %vm276, %vm277
    %v279 = vsel %vm278, %v270, %v275
    %v280 = vrsqrt.pop %v269
    %v281 = vmul.f32 %v280, %v269
    %v282 = vmul.f32 %v281, %v280
    %v283 = vmul.f32 0.5, %v282
    %v284 = vsub.f32 1.5, %v283
    %v285 = vmul.f32 %v280, %v284
    %vm286 = vweird.f32 %v269
    %vm287 = vweird.f32 %v280
    %vm288 = vmor %vm286, %vm287
    %v289 = vsel %vm288, %v280, %v285
    %v290 = vmul.f32 %v243, %v279
    %v291 = vmul.f32 %v244, %v289
    %v292 = vmul.f32 %v254, %v290
    %v293 = vmul.f32 %v255, %v291
    %v294 = vsub.f32 %v246, %v292
    %v295 = vsub.f32 %v247, %v293
    %297 = vset.pattern.permute.xlu0 0
    %298 = vperm.xlu0 %297, %v290
    %v299 = vpop.permute.xlu0 %298
    %302 = vset.pattern.permute.xlu0 0
    %303 = vperm.xlu0 %302, %v291
    %v304 = vpop.permute.xlu0 %303
    %v306 = vmul.f32 %v235, %v299
    %v307 = vmul.f32 %v238, %v304
    %309 = vset.pattern.permute.xlu0 0
    %310 = vperm.xlu0 %309, %v294
    %v311 = vpop.permute.xlu0 %310
    %314 = vset.pattern.permute.xlu0 0
    %315 = vperm.xlu0 %314, %v295
    %v316 = vpop.permute.xlu0 %315
    %v318 = vadd.f32 %v306, %v311
    %v319 = vadd.f32 %v307, %v316
    %v320 = vtanh.pop %v318
    %v321 = vtanh.pop %v319
    %322 = vst.msk [vmem:[%s8 + $0x90] sm:$0xff] %vm107, %v320
    %323 = vst.msk [vmem:[%s8 + $0x98] sm:$0x3] %vm109, %v321
    %s324 = scalar_lea.vmem %s3, 16
    %v325 = vld [vmem:[%s324] sm:$0xff]
    %v326 = vld [vmem:[%s324 + $0x8] sm:$0x3]
    %s327 = scalar_lea.vmem %s4, 32
    %v328 = vld [vmem:[%s327] sm:$0xff]
    %v329 = vld [vmem:[%s327 + $0x8] sm:$0x3]
    %331 = vset.pattern.permute.xlu0 0
    %332 = vperm.xlu0 %331, %v328
    %v333 = vpop.permute.xlu0 %332
    %336 = vset.pattern.permute.xlu0 0
    %337 = vperm.xlu0 %336, %v329
    %v338 = vpop.permute.xlu0 %337
    %v341 = vsel %vm206, %v325, 0
    %v344 = vsel %vm206, %v326, 0
    %v347 = vsel %vm213, %v321, 0
    %349 = vmatpush.msra.mxu0 0.0
    %350 = vmatpush.msra.mxu0 0.0
    %351 = vmatpush.msra.mxu0 0.0
    %352 = vmatpush.msra.mxu0 0.0
    %353 = vmatpush.msra.mxu0 0.0
    %354 = vmatpush.msra.mxu0 0.0
    %355 = vmatpush.msra.mxu0 0.0
    %356 = vmatpush.msra.mxu0 0.0
    %357 = vmatpush.msra.mxu0 0.0
    %358 = vmatpush.msra.mxu0 0.0
    %359 = vmatpush.msra.mxu0 0.0
    %360 = vmatpush.msra.mxu0 0.0
    %361 = vmatpush.msra.mxu0 0.0
    %362 = vmatpush.msra.mxu0 0.0
    %363 = vmatpush.msra.mxu0 %v347
    %364 = vmatpush.msra.mxu0 %v320
    %365 = vmatmul.f32.gmra.mxu0 %v341
    %v366 = vpop.f32.mrf.mxu0
    %v367 = vadd.f32 %v333, %v366
    %368 = vmatmul.f32.gmra.mxu0 %v344
    %v369 = vpop.f32.mrf.mxu0
    %v370 = vadd.f32 %v338, %v369
    %371 = vdwg.mxu0
    %372 = vst.msk [vmem:[%s8 + $0x20] sm:$0xff] %vm107, %v367
    %373 = vst.msk [vmem:[%s8 + $0x28] sm:$0x3] %vm109, %v370
    %s374 = scalar_lea.vmem %s5, 32
    %v375 = vld [vmem:[%s374] sm:$0xff]
    %v376 = vld [vmem:[%s374 + $0x8] sm:$0x3]
    %s377 = scalar_lea.vmem %s6, 32
    %v378 = vld [vmem:[%s377] sm:$0xff]
    %v379 = vld [vmem:[%s377 + $0x8] sm:$0x3]
    %v380 = vsel %vm107, %v367, 0.0
    %381 = vadd.xlane.f32.xlu0 %v380
    %v382 = vpop.xlane.xlu0 %381
    %v383 = vsel %vm109, %v370, 0.0
    %384 = vadd.xlane.f32.xlu0 %v383
    %v385 = vpop.xlane.xlu0 %384
    %v386 = vmul.f32 %v382, 0.015625
    %v387 = vmul.f32 %v385, 0.015625
    %v388 = vsub.f32 %v367, %v386
    %v389 = vsub.f32 %v370, %v387
    %v390 = vmul.f32 %v388, %v388
    %v391 = vmul.f32 %v389, %v389
    %v392 = vsel %vm107, %v390, 0.0
    %393 = vadd.xlane.f32.xlu0 %v392
    %v394 = vpop.xlane.xlu0 %393
    %v395 = vsel %vm109, %v391, 0.0
    %396 = vadd.xlane.f32.xlu0 %v395
    %v397 = vpop.xlane.xlu0 %396
    %v398 = vmul.f32 %v394, 0.015625
    %v399 = vmul.f32 %v397, 0.015625
    %v400 = vadd.f32 %v398, 1e-05
    %v401 = vadd.f32 %v399, 1e-05
    %v402 = vrsqrt.pop %v400
    %v403 = vmul.f32 %v402, %v400
    %v404 = vmul.f32 %v403, %v402
    %v405 = vmul.f32 0.5, %v404
    %v406 = vsub.f32 1.5, %v405
    %v407 = vmul.f32 %v402, %v406
    %vm408 = vweird.f32 %v400
    %vm409 = vweird.f32 %v402
    %vm410 = vmor %vm408, %vm409
    %v411 = vsel %vm410, %v402, %v407
    %v412 = vrsqrt.pop %v401
    %v413 = vmul.f32 %v412, %v401
    %v414 = vmul.f32 %v413, %v412
    %v415 = vmul.f32 0.5, %v414
    %v416 = vsub.f32 1.5, %v415
    %v417 = vmul.f32 %v412, %v416
    %vm418 = vweird.f32 %v401
    %vm419 = vweird.f32 %v412
    %vm420 = vmor %vm418, %vm419
    %v421 = vsel %vm420, %v412, %v417
    %v422 = vmul.f32 %v375, %v411
    %v423 = vmul.f32 %v376, %v421
    %v424 = vmul.f32 %v386, %v422
    %v425 = vmul.f32 %v387, %v423
    %v426 = vsub.f32 %v378, %v424
    %v427 = vsub.f32 %v379, %v425
    %429 = vset.pattern.permute.xlu0 0
    %430 = vperm.xlu0 %429, %v422
    %v431 = vpop.permute.xlu0 %430
    %434 = vset.pattern.permute.xlu0 0
    %435 = vperm.xlu0 %434, %v423
    %v436 = vpop.permute.xlu0 %435
    %v438 = vmul.f32 %v367, %v431
    %v439 = vmul.f32 %v370, %v436
    %441 = vset.pattern.permute.xlu0 0
    %442 = vperm.xlu0 %441, %v426
    %v443 = vpop.permute.xlu0 %442
    %446 = vset.pattern.permute.xlu0 0
    %447 = vperm.xlu0 %446, %v427
    %v448 = vpop.permute.xlu0 %447
    %v450 = vadd.f32 %v438, %v443
    %v451 = vadd.f32 %v439, %v448
    %v452 = vtanh.pop %v450
    %v453 = vtanh.pop %v451
    %454 = vst.msk [vmem:[%s8 + $0xa0] sm:$0xff] %vm107, %v452
    %455 = vst.msk [vmem:[%s8 + $0xa8] sm:$0x3] %vm109, %v453
    %s456 = scalar_lea.vmem %s3, 32
    %v457 = vld [vmem:[%s456] sm:$0xff]
    %v458 = vld [vmem:[%s456 + $0x8] sm:$0x3]
    %s459 = scalar_lea.vmem %s4, 48
    %v460 = vld [vmem:[%s459] sm:$0xff]
    %v461 = vld [vmem:[%s459 + $0x8] sm:$0x3]
    %463 = vset.pattern.permute.xlu0 0
    %464 = vperm.xlu0 %463, %v460
    %v465 = vpop.permute.xlu0 %464
    %468 = vset.pattern.permute.xlu0 0
    %469 = vperm.xlu0 %468, %v461
    %v470 = vpop.permute.xlu0 %469
    %v473 = vsel %vm206, %v457, 0
    %v476 = vsel %vm206, %v458, 0
    %v479 = vsel %vm213, %v453, 0
    %481 = vmatpush.msra.mxu0 0.0
    %482 = vmatpush.msra.mxu0 0.0
    %483 = vmatpush.msra.mxu0 0.0
    %484 = vmatpush.msra.mxu0 0.0
    %485 = vmatpush.msra.mxu0 0.0
    %486 = vmatpush.msra.mxu0 0.0
    %487 = vmatpush.msra.mxu0 0.0
    %488 = vmatpush.msra.mxu0 0.0
    %489 = vmatpush.msra.mxu0 0.0
    %490 = vmatpush.msra.mxu0 0.0
    %491 = vmatpush.msra.mxu0 0.0
    %492 = vmatpush.msra.mxu0 0.0
    %493 = vmatpush.msra.mxu0 0.0
    %494 = vmatpush.msra.mxu0 0.0
    %495 = vmatpush.msra.mxu0 %v479
    %496 = vmatpush.msra.mxu0 %v452
    %497 = vmatmul.f32.gmra.mxu0 %v473
    %v498 = vpop.f32.mrf.mxu0
    %v499 = vadd.f32 %v465, %v498
    %500 = vmatmul.f32.gmra.mxu0 %v476
    %v501 = vpop.f32.mrf.mxu0
    %v502 = vadd.f32 %v470, %v501
    %503 = vdwg.mxu0
    %504 = vst.msk [vmem:[%s8 + $0x30] sm:$0xff] %vm107, %v499
    %505 = vst.msk [vmem:[%s8 + $0x38] sm:$0x3] %vm109, %v502
    %s506 = scalar_lea.vmem %s5, 48
    %v507 = vld [vmem:[%s506] sm:$0xff]
    %v508 = vld [vmem:[%s506 + $0x8] sm:$0x3]
    %s509 = scalar_lea.vmem %s6, 48
    %v510 = vld [vmem:[%s509] sm:$0xff]
    %v511 = vld [vmem:[%s509 + $0x8] sm:$0x3]
    %v512 = vsel %vm107, %v499, 0.0
    %513 = vadd.xlane.f32.xlu0 %v512
    %v514 = vpop.xlane.xlu0 %513
    %v515 = vsel %vm109, %v502, 0.0
    %516 = vadd.xlane.f32.xlu0 %v515
    %v517 = vpop.xlane.xlu0 %516
    %v518 = vmul.f32 %v514, 0.015625
    %v519 = vmul.f32 %v517, 0.015625
    %v520 = vsub.f32 %v499, %v518
    %v521 = vsub.f32 %v502, %v519
    %v522 = vmul.f32 %v520, %v520
    %v523 = vmul.f32 %v521, %v521
    %v524 = vsel %vm107, %v522, 0.0
    %525 = vadd.xlane.f32.xlu0 %v524
    %v526 = vpop.xlane.xlu0 %525
    %v527 = vsel %vm109, %v523, 0.0
    %528 = vadd.xlane.f32.xlu0 %v527
    %v529 = vpop.xlane.xlu0 %528
    %v530 = vmul.f32 %v526, 0.015625
    %v531 = vmul.f32 %v529, 0.015625
    %v532 = vadd.f32 %v530, 1e-05
    %v533 = vadd.f32 %v531, 1e-05
    %v534 = vrsqrt.pop %v532
    %v535 = vmul.f32 %v534, %v532
    %v536 = vmul.f32 %v535, %v534
    %v537 = vmul.f32 0.5, %v536
    %v538 = vsub.f32 1.5, %v537
    %v539 = vmul.f32 %v534, %v538
    %vm540 = vweird.f32 %v532
    %vm541 = vweird.f32 %v534
    %vm542 = vmor %vm540, %vm541
    %v543 = vsel %vm542, %v534, %v539
    %v544 = vrsqrt.pop %v533
    %v545 = vmul.f32 %v544, %v533
    %v546 = vmul.f32 %v545, %v544
    %v547 = vmul.f32 0.5, %v546
    %v548 = vsub.f32 1.5, %v547
    %v549 = vmul.f32 %v544, %v548
    %vm550 = vweird.f32 %v533
    %vm551 = vweird.f32 %v544
    %vm552 = vmor %vm550, %vm551
    %v553 = vsel %vm552, %v544, %v549
    %v554 = vmul.f32 %v507, %v543
    %v555 = vmul.f32 %v508, %v553
    %v556 = vmul.f32 %v518, %v554
    %v557 = vmul.f32 %v519, %v555
    %v558 = vsub.f32 %v510, %v556
    %v559 = vsub.f32 %v511, %v557
    %561 = vset.pattern.permute.xlu0 0
    %562 = vperm.xlu0 %561, %v554
    %v563 = vpop.permute.xlu0 %562
    %566 = vset.pattern.permute.xlu0 0
    %567 = vperm.xlu0 %566, %v555
    %v568 = vpop.permute.xlu0 %567
    %v570 = vmul.f32 %v499, %v563
    %v571 = vmul.f32 %v502, %v568
    %573 = vset.pattern.permute.xlu0 0
    %574 = vperm.xlu0 %573, %v558
    %v575 = vpop.permute.xlu0 %574
    %578 = vset.pattern.permute.xlu0 0
    %579 = vperm.xlu0 %578, %v559
    %v580 = vpop.permute.xlu0 %579
    %v582 = vadd.f32 %v570, %v575
    %v583 = vadd.f32 %v571, %v580
    %v584 = vtanh.pop %v582
    %v585 = vtanh.pop %v583
    %586 = vst.msk [vmem:[%s8 + $0xb0] sm:$0xff] %vm107, %v584
    %587 = vst.msk [vmem:[%s8 + $0xb8] sm:$0x3] %vm109, %v585
    %s588 = scalar_lea.vmem %s3, 48
    %v589 = vld [vmem:[%s588] sm:$0xff]
    %v590 = vld [vmem:[%s588 + $0x8] sm:$0x3]
    %s591 = scalar_lea.vmem %s4, 64
    %v592 = vld [vmem:[%s591] sm:$0xff]
    %v593 = vld [vmem:[%s591 + $0x8] sm:$0x3]
    %595 = vset.pattern.permute.xlu0 0
    %596 = vperm.xlu0 %595, %v592
    %v597 = vpop.permute.xlu0 %596
    %600 = vset.pattern.permute.xlu0 0
    %601 = vperm.xlu0 %600, %v593
    %v602 = vpop.permute.xlu0 %601
    %v605 = vsel %vm206, %v589, 0
    %v608 = vsel %vm206, %v590, 0
    %v611 = vsel %vm213, %v585, 0
    %613 = vmatpush.msra.mxu0 0.0
    %614 = vmatpush.msra.mxu0 0.0
    %615 = vmatpush.msra.mxu0 0.0
    %616 = vmatpush.msra.mxu0 0.0
    %617 = vmatpush.msra.mxu0 0.0
    %618 = vmatpush.msra.mxu0 0.0
    %619 = vmatpush.msra.mxu0 0.0
    %620 = vmatpush.msra.mxu0 0.0
    %621 = vmatpush.msra.mxu0 0.0
    %622 = vmatpush.msra.mxu0 0.0
    %623 = vmatpush.msra.mxu0 0.0
    %624 = vmatpush.msra.mxu0 0.0
    %625 = vmatpush.msra.mxu0 0.0
    %626 = vmatpush.msra.mxu0 0.0
    %627 = vmatpush.msra.mxu0 %v611
    %628 = vmatpush.msra.mxu0 %v584
    %629 = vmatmul.f32.gmra.mxu0 %v605
    %v630 = vpop.f32.mrf.mxu0
    %v631 = vadd.f32 %v597, %v630
    %632 = vmatmul.f32.gmra.mxu0 %v608
    %v633 = vpop.f32.mrf.mxu0
    %v634 = vadd.f32 %v602, %v633
    %635 = vdwg.mxu0
    %636 = vst.msk [vmem:[%s8 + $0x40] sm:$0xff] %vm107, %v631
    %637 = vst.msk [vmem:[%s8 + $0x48] sm:$0x3] %vm109, %v634
    %s638 = scalar_lea.vmem %s5, 64
    %v639 = vld [vmem:[%s638] sm:$0xff]
    %v640 = vld [vmem:[%s638 + $0x8] sm:$0x3]
    %s641 = scalar_lea.vmem %s6, 64
    %v642 = vld [vmem:[%s641] sm:$0xff]
    %v643 = vld [vmem:[%s641 + $0x8] sm:$0x3]
    %v644 = vsel %vm107, %v631, 0.0
    %645 = vadd.xlane.f32.xlu0 %v644
    %v646 = vpop.xlane.xlu0 %645
    %v647 = vsel %vm109, %v634, 0.0
    %648 = vadd.xlane.f32.xlu0 %v647
    %v649 = vpop.xlane.xlu0 %648
    %v650 = vmul.f32 %v646, 0.015625
    %v651 = vmul.f32 %v649, 0.015625
    %v652 = vsub.f32 %v631, %v650
    %v653 = vsub.f32 %v634, %v651
    %v654 = vmul.f32 %v652, %v652
    %v655 = vmul.f32 %v653, %v653
    %v656 = vsel %vm107, %v654, 0.0
    %657 = vadd.xlane.f32.xlu0 %v656
    %v658 = vpop.xlane.xlu0 %657
    %v659 = vsel %vm109, %v655, 0.0
    %660 = vadd.xlane.f32.xlu0 %v659
    %v661 = vpop.xlane.xlu0 %660
    %v662 = vmul.f32 %v658, 0.015625
    %v663 = vmul.f32 %v661, 0.015625
    %v664 = vadd.f32 %v662, 1e-05
    %v665 = vadd.f32 %v663, 1e-05
    %v666 = vrsqrt.pop %v664
    %v667 = vmul.f32 %v666, %v664
    %v668 = vmul.f32 %v667, %v666
    %v669 = vmul.f32 0.5, %v668
    %v670 = vsub.f32 1.5, %v669
    %v671 = vmul.f32 %v666, %v670
    %vm672 = vweird.f32 %v664
    %vm673 = vweird.f32 %v666
    %vm674 = vmor %vm672, %vm673
    %v675 = vsel %vm674, %v666, %v671
    %v676 = vrsqrt.pop %v665
    %v677 = vmul.f32 %v676, %v665
    %v678 = vmul.f32 %v677, %v676
    %v679 = vmul.f32 0.5, %v678
    %v680 = vsub.f32 1.5, %v679
    %v681 = vmul.f32 %v676, %v680
    %vm682 = vweird.f32 %v665
    %vm683 = vweird.f32 %v676
    %vm684 = vmor %vm682, %vm683
    %v685 = vsel %vm684, %v676, %v681
    %v686 = vmul.f32 %v639, %v675
    %v687 = vmul.f32 %v640, %v685
    %v688 = vmul.f32 %v650, %v686
    %v689 = vmul.f32 %v651, %v687
    %v690 = vsub.f32 %v642, %v688
    %v691 = vsub.f32 %v643, %v689
    %693 = vset.pattern.permute.xlu0 0
    %694 = vperm.xlu0 %693, %v686
    %v695 = vpop.permute.xlu0 %694
    %698 = vset.pattern.permute.xlu0 0
    %699 = vperm.xlu0 %698, %v687
    %v700 = vpop.permute.xlu0 %699
    %v702 = vmul.f32 %v631, %v695
    %v703 = vmul.f32 %v634, %v700
    %705 = vset.pattern.permute.xlu0 0
    %706 = vperm.xlu0 %705, %v690
    %v707 = vpop.permute.xlu0 %706
    %710 = vset.pattern.permute.xlu0 0
    %711 = vperm.xlu0 %710, %v691
    %v712 = vpop.permute.xlu0 %711
    %v714 = vadd.f32 %v702, %v707
    %v715 = vadd.f32 %v703, %v712
    %v716 = vtanh.pop %v714
    %v717 = vtanh.pop %v715
    %718 = vst.msk [vmem:[%s8 + $0xc0] sm:$0xff] %vm107, %v716
    %719 = vst.msk [vmem:[%s8 + $0xc8] sm:$0x3] %vm109, %v717
    %s720 = scalar_lea.vmem %s3, 64
    %v721 = vld [vmem:[%s720] sm:$0xff]
    %v722 = vld [vmem:[%s720 + $0x8] sm:$0x3]
    %s723 = scalar_lea.vmem %s4, 80
    %v724 = vld [vmem:[%s723] sm:$0xff]
    %v725 = vld [vmem:[%s723 + $0x8] sm:$0x3]
    %727 = vset.pattern.permute.xlu0 0
    %728 = vperm.xlu0 %727, %v724
    %v729 = vpop.permute.xlu0 %728
    %732 = vset.pattern.permute.xlu0 0
    %733 = vperm.xlu0 %732, %v725
    %v734 = vpop.permute.xlu0 %733
    %v737 = vsel %vm206, %v721, 0
    %v740 = vsel %vm206, %v722, 0
    %v743 = vsel %vm213, %v717, 0
    %745 = vmatpush.msra.mxu0 0.0
    %746 = vmatpush.msra.mxu0 0.0
    %747 = vmatpush.msra.mxu0 0.0
    %748 = vmatpush.msra.mxu0 0.0
    %749 = vmatpush.msra.mxu0 0.0
    %750 = vmatpush.msra.mxu0 0.0
    %751 = vmatpush.msra.mxu0 0.0
    %752 = vmatpush.msra.mxu0 0.0
    %753 = vmatpush.msra.mxu0 0.0
    %754 = vmatpush.msra.mxu0 0.0
    %755 = vmatpush.msra.mxu0 0.0
    %756 = vmatpush.msra.mxu0 0.0
    %757 = vmatpush.msra.mxu0 0.0
    %758 = vmatpush.msra.mxu0 0.0
    %759 = vmatpush.msra.mxu0 %v743
    %760 = vmatpush.msra.mxu0 %v716
    %761 = vmatmul.f32.gmra.mxu0 %v737
    %v762 = vpop.f32.mrf.mxu0
    %v763 = vadd.f32 %v729, %v762
    %764 = vmatmul.f32.gmra.mxu0 %v740
    %v765 = vpop.f32.mrf.mxu0
    %v766 = vadd.f32 %v734, %v765
    %767 = vdwg.mxu0
    %768 = vst.msk [vmem:[%s8 + $0x50] sm:$0xff] %vm107, %v763
    %769 = vst.msk [vmem:[%s8 + $0x58] sm:$0x3] %vm109, %v766
    %s770 = scalar_lea.vmem %s5, 80
    %v771 = vld [vmem:[%s770] sm:$0xff]
    %v772 = vld [vmem:[%s770 + $0x8] sm:$0x3]
    %s773 = scalar_lea.vmem %s6, 80
    %v774 = vld [vmem:[%s773] sm:$0xff]
    %v775 = vld [vmem:[%s773 + $0x8] sm:$0x3]
    %v776 = vsel %vm107, %v763, 0.0
    %777 = vadd.xlane.f32.xlu0 %v776
    %v778 = vpop.xlane.xlu0 %777
    %v779 = vsel %vm109, %v766, 0.0
    %780 = vadd.xlane.f32.xlu0 %v779
    %v781 = vpop.xlane.xlu0 %780
    %v782 = vmul.f32 %v778, 0.015625
    %v783 = vmul.f32 %v781, 0.015625
    %v784 = vsub.f32 %v763, %v782
    %v785 = vsub.f32 %v766, %v783
    %v786 = vmul.f32 %v784, %v784
    %v787 = vmul.f32 %v785, %v785
    %v788 = vsel %vm107, %v786, 0.0
    %789 = vadd.xlane.f32.xlu0 %v788
    %v790 = vpop.xlane.xlu0 %789
    %v791 = vsel %vm109, %v787, 0.0
    %792 = vadd.xlane.f32.xlu0 %v791
    %v793 = vpop.xlane.xlu0 %792
    %v794 = vmul.f32 %v790, 0.015625
    %v795 = vmul.f32 %v793, 0.015625
    %v796 = vadd.f32 %v794, 1e-05
    %v797 = vadd.f32 %v795, 1e-05
    %v798 = vrsqrt.pop %v796
    %v799 = vmul.f32 %v798, %v796
    %v800 = vmul.f32 %v799, %v798
    %v801 = vmul.f32 0.5, %v800
    %v802 = vsub.f32 1.5, %v801
    %v803 = vmul.f32 %v798, %v802
    %vm804 = vweird.f32 %v796
    %vm805 = vweird.f32 %v798
    %vm806 = vmor %vm804, %vm805
    %v807 = vsel %vm806, %v798, %v803
    %v808 = vrsqrt.pop %v797
    %v809 = vmul.f32 %v808, %v797
    %v810 = vmul.f32 %v809, %v808
    %v811 = vmul.f32 0.5, %v810
    %v812 = vsub.f32 1.5, %v811
    %v813 = vmul.f32 %v808, %v812
    %vm814 = vweird.f32 %v797
    %vm815 = vweird.f32 %v808
    %vm816 = vmor %vm814, %vm815
    %v817 = vsel %vm816, %v808, %v813
    %v818 = vmul.f32 %v771, %v807
    %v819 = vmul.f32 %v772, %v817
    %v820 = vmul.f32 %v782, %v818
    %v821 = vmul.f32 %v783, %v819
    %v822 = vsub.f32 %v774, %v820
    %v823 = vsub.f32 %v775, %v821
    %825 = vset.pattern.permute.xlu0 0
    %826 = vperm.xlu0 %825, %v818
    %v827 = vpop.permute.xlu0 %826
    %830 = vset.pattern.permute.xlu0 0
    %831 = vperm.xlu0 %830, %v819
    %v832 = vpop.permute.xlu0 %831
    %v834 = vmul.f32 %v763, %v827
    %v835 = vmul.f32 %v766, %v832
    %837 = vset.pattern.permute.xlu0 0
    %838 = vperm.xlu0 %837, %v822
    %v839 = vpop.permute.xlu0 %838
    %842 = vset.pattern.permute.xlu0 0
    %843 = vperm.xlu0 %842, %v823
    %v844 = vpop.permute.xlu0 %843
    %v846 = vadd.f32 %v834, %v839
    %v847 = vadd.f32 %v835, %v844
    %v848 = vtanh.pop %v846
    %v849 = vtanh.pop %v847
    %850 = vst.msk [vmem:[%s8 + $0xd0] sm:$0xff] %vm107, %v848
    %851 = vst.msk [vmem:[%s8 + $0xd8] sm:$0x3] %vm109, %v849
    %s852 = scalar_lea.vmem %s3, 80
    %v853 = vld [vmem:[%s852] sm:$0xff]
    %v854 = vld [vmem:[%s852 + $0x8] sm:$0x3]
    %s855 = scalar_lea.vmem %s4, 96
    %v856 = vld [vmem:[%s855] sm:$0xff]
    %v857 = vld [vmem:[%s855 + $0x8] sm:$0x3]
    %859 = vset.pattern.permute.xlu0 0
    %860 = vperm.xlu0 %859, %v856
    %v861 = vpop.permute.xlu0 %860
    %864 = vset.pattern.permute.xlu0 0
    %865 = vperm.xlu0 %864, %v857
    %v866 = vpop.permute.xlu0 %865
    %v869 = vsel %vm206, %v853, 0
    %v872 = vsel %vm206, %v854, 0
    %v875 = vsel %vm213, %v849, 0
    %877 = vmatpush.msra.mxu0 0.0
    %878 = vmatpush.msra.mxu0 0.0
    %879 = vmatpush.msra.mxu0 0.0
    %880 = vmatpush.msra.mxu0 0.0
    %881 = vmatpush.msra.mxu0 0.0
    %882 = vmatpush.msra.mxu0 0.0
    %883 = vmatpush.msra.mxu0 0.0
    %884 = vmatpush.msra.mxu0 0.0
    %885 = vmatpush.msra.mxu0 0.0
    %886 = vmatpush.msra.mxu0 0.0
    %887 = vmatpush.msra.mxu0 0.0
    %888 = vmatpush.msra.mxu0 0.0
    %889 = vmatpush.msra.mxu0 0.0
    %890 = vmatpush.msra.mxu0 0.0
    %891 = vmatpush.msra.mxu0 %v875
    %892 = vmatpush.msra.mxu0 %v848
    %893 = vmatmul.f32.gmra.mxu0 %v869
    %v894 = vpop.f32.mrf.mxu0
    %v895 = vadd.f32 %v861, %v894
    %896 = vmatmul.f32.gmra.mxu0 %v872
    %v897 = vpop.f32.mrf.mxu0
    %v898 = vadd.f32 %v866, %v897
    %899 = vdwg.mxu0
    %900 = vst.msk [vmem:[%s8 + $0x60] sm:$0xff] %vm107, %v895
    %901 = vst.msk [vmem:[%s8 + $0x68] sm:$0x3] %vm109, %v898
    %s902 = scalar_lea.vmem %s5, 96
    %v903 = vld [vmem:[%s902] sm:$0xff]
    %v904 = vld [vmem:[%s902 + $0x8] sm:$0x3]
    %s905 = scalar_lea.vmem %s6, 96
    %v906 = vld [vmem:[%s905] sm:$0xff]
    %v907 = vld [vmem:[%s905 + $0x8] sm:$0x3]
    %v908 = vsel %vm107, %v895, 0.0
    %909 = vadd.xlane.f32.xlu0 %v908
    %v910 = vpop.xlane.xlu0 %909
    %v911 = vsel %vm109, %v898, 0.0
    %912 = vadd.xlane.f32.xlu0 %v911
    %v913 = vpop.xlane.xlu0 %912
    %v914 = vmul.f32 %v910, 0.015625
    %v915 = vmul.f32 %v913, 0.015625
    %v916 = vsub.f32 %v895, %v914
    %v917 = vsub.f32 %v898, %v915
    %v918 = vmul.f32 %v916, %v916
    %v919 = vmul.f32 %v917, %v917
    %v920 = vsel %vm107, %v918, 0.0
    %921 = vadd.xlane.f32.xlu0 %v920
    %v922 = vpop.xlane.xlu0 %921
    %v923 = vsel %vm109, %v919, 0.0
    %924 = vadd.xlane.f32.xlu0 %v923
    %v925 = vpop.xlane.xlu0 %924
    %v926 = vmul.f32 %v922, 0.015625
    %v927 = vmul.f32 %v925, 0.015625
    %v928 = vadd.f32 %v926, 1e-05
    %v929 = vadd.f32 %v927, 1e-05
    %v930 = vrsqrt.pop %v928
    %v931 = vmul.f32 %v930, %v928
    %v932 = vmul.f32 %v931, %v930
    %v933 = vmul.f32 0.5, %v932
    %v934 = vsub.f32 1.5, %v933
    %v935 = vmul.f32 %v930, %v934
    %vm936 = vweird.f32 %v928
    %vm937 = vweird.f32 %v930
    %vm938 = vmor %vm936, %vm937
    %v939 = vsel %vm938, %v930, %v935
    %v940 = vrsqrt.pop %v929
    %v941 = vmul.f32 %v940, %v929
    %v942 = vmul.f32 %v941, %v940
    %v943 = vmul.f32 0.5, %v942
    %v944 = vsub.f32 1.5, %v943
    %v945 = vmul.f32 %v940, %v944
    %vm946 = vweird.f32 %v929
    %vm947 = vweird.f32 %v940
    %vm948 = vmor %vm946, %vm947
    %v949 = vsel %vm948, %v940, %v945
    %v950 = vmul.f32 %v903, %v939
    %v951 = vmul.f32 %v904, %v949
    %v952 = vmul.f32 %v914, %v950
    %v953 = vmul.f32 %v915, %v951
    %v954 = vsub.f32 %v906, %v952
    %v955 = vsub.f32 %v907, %v953
    %957 = vset.pattern.permute.xlu0 0
    %958 = vperm.xlu0 %957, %v950
    %v959 = vpop.permute.xlu0 %958
    %962 = vset.pattern.permute.xlu0 0
    %963 = vperm.xlu0 %962, %v951
    %v964 = vpop.permute.xlu0 %963
    %v966 = vmul.f32 %v895, %v959
    %v967 = vmul.f32 %v898, %v964
    %969 = vset.pattern.permute.xlu0 0
    %970 = vperm.xlu0 %969, %v954
    %v971 = vpop.permute.xlu0 %970
    %974 = vset.pattern.permute.xlu0 0
    %975 = vperm.xlu0 %974, %v955
    %v976 = vpop.permute.xlu0 %975
    %v978 = vadd.f32 %v966, %v971
    %v979 = vadd.f32 %v967, %v976
    %v980 = vtanh.pop %v978
    %v981 = vtanh.pop %v979
    %982 = vst.msk [vmem:[%s8 + $0xe0] sm:$0xff] %vm107, %v980
    %983 = vst.msk [vmem:[%s8 + $0xe8] sm:$0x3] %vm109, %v981
    %s984 = scalar_lea.vmem %s3, 96
    %v985 = vld [vmem:[%s984] sm:$0xff]
    %v986 = vld [vmem:[%s984 + $0x8] sm:$0x3]
    %s987 = scalar_lea.vmem %s4, 112
    %v988 = vld [vmem:[%s987] sm:$0xff]
    %v989 = vld [vmem:[%s987 + $0x8] sm:$0x3]
    %991 = vset.pattern.permute.xlu0 0
    %992 = vperm.xlu0 %991, %v988
    %v993 = vpop.permute.xlu0 %992
    %996 = vset.pattern.permute.xlu0 0
    %997 = vperm.xlu0 %996, %v989
    %v998 = vpop.permute.xlu0 %997
    %v1001 = vsel %vm206, %v985, 0
    %v1004 = vsel %vm206, %v986, 0
    %v1007 = vsel %vm213, %v981, 0
    %1009 = vmatpush.msra.mxu0 0.0
    %1010 = vmatpush.msra.mxu0 0.0
    %1011 = vmatpush.msra.mxu0 0.0
    %1012 = vmatpush.msra.mxu0 0.0
    %1013 = vmatpush.msra.mxu0 0.0
    %1014 = vmatpush.msra.mxu0 0.0
    %1015 = vmatpush.msra.mxu0 0.0
    %1016 = vmatpush.msra.mxu0 0.0
    %1017 = vmatpush.msra.mxu0 0.0
    %1018 = vmatpush.msra.mxu0 0.0
    %1019 = vmatpush.msra.mxu0 0.0
    %1020 = vmatpush.msra.mxu0 0.0
    %1021 = vmatpush.msra.mxu0 0.0
    %1022 = vmatpush.msra.mxu0 0.0
    %1023 = vmatpush.msra.mxu0 %v1007
    %1024 = vmatpush.msra.mxu0 %v980
    %1025 = vmatmul.f32.gmra.mxu0 %v1001
    %v1026 = vpop.f32.mrf.mxu0
    %v1027 = vadd.f32 %v993, %v1026
    %1028 = vmatmul.f32.gmra.mxu0 %v1004
    %v1029 = vpop.f32.mrf.mxu0
    %v1030 = vadd.f32 %v998, %v1029
    %1031 = vdwg.mxu0
    %1032 = vst.msk [vmem:[%s8 + $0x70] sm:$0xff] %vm107, %v1027
    %1033 = vst.msk [vmem:[%s8 + $0x78] sm:$0x3] %vm109, %v1030
    %s1034 = scalar_lea.vmem %s5, 112
    %v1035 = vld [vmem:[%s1034] sm:$0xff]
    %v1036 = vld [vmem:[%s1034 + $0x8] sm:$0x3]
    %s1037 = scalar_lea.vmem %s6, 112
    %v1038 = vld [vmem:[%s1037] sm:$0xff]
    %v1039 = vld [vmem:[%s1037 + $0x8] sm:$0x3]
    %v1040 = vsel %vm107, %v1027, 0.0
    %1041 = vadd.xlane.f32.xlu0 %v1040
    %v1042 = vpop.xlane.xlu0 %1041
    %v1043 = vsel %vm109, %v1030, 0.0
    %1044 = vadd.xlane.f32.xlu0 %v1043
    %v1045 = vpop.xlane.xlu0 %1044
    %v1046 = vmul.f32 %v1042, 0.015625
    %v1047 = vmul.f32 %v1045, 0.015625
    %v1048 = vsub.f32 %v1027, %v1046
    %v1049 = vsub.f32 %v1030, %v1047
    %v1050 = vmul.f32 %v1048, %v1048
    %v1051 = vmul.f32 %v1049, %v1049
    %v1052 = vsel %vm107, %v1050, 0.0
    %1053 = vadd.xlane.f32.xlu0 %v1052
    %v1054 = vpop.xlane.xlu0 %1053
    %v1055 = vsel %vm109, %v1051, 0.0
    %1056 = vadd.xlane.f32.xlu0 %v1055
    %v1057 = vpop.xlane.xlu0 %1056
    %v1058 = vmul.f32 %v1054, 0.015625
    %v1059 = vmul.f32 %v1057, 0.015625
    %v1060 = vadd.f32 %v1058, 1e-05
    %v1061 = vadd.f32 %v1059, 1e-05
    %v1062 = vrsqrt.pop %v1060
    %v1063 = vmul.f32 %v1062, %v1060
    %v1064 = vmul.f32 %v1063, %v1062
    %v1065 = vmul.f32 0.5, %v1064
    %v1066 = vsub.f32 1.5, %v1065
    %v1067 = vmul.f32 %v1062, %v1066
    %vm1068 = vweird.f32 %v1060
    %vm1069 = vweird.f32 %v1062
    %vm1070 = vmor %vm1068, %vm1069
    %v1071 = vsel %vm1070, %v1062, %v1067
    %v1072 = vrsqrt.pop %v1061
    %v1073 = vmul.f32 %v1072, %v1061
    %v1074 = vmul.f32 %v1073, %v1072
    %v1075 = vmul.f32 0.5, %v1074
    %v1076 = vsub.f32 1.5, %v1075
    %v1077 = vmul.f32 %v1072, %v1076
    %vm1078 = vweird.f32 %v1061
    %vm1079 = vweird.f32 %v1072
    %vm1080 = vmor %vm1078, %vm1079
    %v1081 = vsel %vm1080, %v1072, %v1077
    %v1082 = vmul.f32 %v1035, %v1071
    %v1083 = vmul.f32 %v1036, %v1081
    %v1084 = vmul.f32 %v1046, %v1082
    %v1085 = vmul.f32 %v1047, %v1083
    %v1086 = vsub.f32 %v1038, %v1084
    %v1087 = vsub.f32 %v1039, %v1085
    %1089 = vset.pattern.permute.xlu0 0
    %1090 = vperm.xlu0 %1089, %v1082
    %v1091 = vpop.permute.xlu0 %1090
    %1094 = vset.pattern.permute.xlu0 0
    %1095 = vperm.xlu0 %1094, %v1083
    %v1096 = vpop.permute.xlu0 %1095
    %v1098 = vmul.f32 %v1027, %v1091
    %v1099 = vmul.f32 %v1030, %v1096
    %1101 = vset.pattern.permute.xlu0 0
    %1102 = vperm.xlu0 %1101, %v1086
    %v1103 = vpop.permute.xlu0 %1102
    %1106 = vset.pattern.permute.xlu0 0
    %1107 = vperm.xlu0 %1106, %v1087
    %v1108 = vpop.permute.xlu0 %1107
    %v1110 = vadd.f32 %v1098, %v1103
    %v1111 = vadd.f32 %v1099, %v1108
    %v1112 = vtanh.pop %v1110
    %v1113 = vtanh.pop %v1111
    %1114 = vst.msk [vmem:[%s8 + $0xf0] sm:$0xff] %vm107, %v1112
    %1115 = vst.msk [vmem:[%s8 + $0xf8] sm:$0x3] %vm109, %v1113
    %v1116 = vld [vmem:[%s7] sm:$0xff]
    %v1117 = vld [vmem:[%s7 + $0x8] sm:$0x3]
    %1119 = vset.pattern.permute.xlu0 0
    %1120 = vperm.xlu0 %1119, %v1116
    %v1121 = vpop.permute.xlu0 %1120
    %1124 = vset.pattern.permute.xlu0 0
    %1125 = vperm.xlu0 %1124, %v1117
    %v1126 = vpop.permute.xlu0 %1125
    %v1128 = vmul.f32 %v1121, %v1112
    %v1129 = vmul.f32 %v1126, %v1113
    %v1130 = vsel %vm107, %v1128, 0.0
    %v1131 = vsel %vm109, %v1129, 0.0
    %v1132 = vadd.f32 %v1130, %v1131
    %v1133 = vrot.slane %v1132, 4
    %v1134 = vadd.f32 %v1132, %v1133
    %v1135 = vrot.slane %v1134, 2
    %v1136 = vadd.f32 %v1134, %v1135
    %v1137 = vrot.slane %v1136, 1
    %v1138 = vadd.f32 %v1136, %v1137
    %v1139 = vstv %s44
    %v1140 = vadd.f32 %v1138, %v1139
    %1141 = vst.msk [vmem:[%s8 + $0x101] sm:$0x1] %vm46, %v1140
    // Predicated region
    $region38: #{tpu_custom_call.1} parent=1 // pred_check
      _
    $region39: #{tpu_custom_call.1} parent=1 // pred_check_branch
      %1143 = sbr.rel (0) target = $region41
    $region40: #{tpu_custom_call.1} parent=1 // pred_region
      _
    $region41: #{tpu_custom_call.1} parent=1 // pred_fallthru
      _
    // Predicated region
    $region42: #{tpu_custom_call.1} parent=1 // pred_check
      _
    $region43: #{tpu_custom_call.1} parent=1 // pred_check_branch
      %1145 = sbr.rel (0) target = $region45
    $region44: #{tpu_custom_call.1} parent=1 // pred_region
      _
    $region45: #{tpu_custom_call.1} parent=1 // pred_fallthru
      _
    %1146 = vsyncpa [#allocation3], 1

</llo_original>
